<compile_context>
chip_gen: v7x
topology: tpu7x:2x2x1
jax: 0.10.0
libtpu: 0.0.40
codegen_flags: <defaults>
</compile_context>

<pallas_src>
import functools

import jax
import jax.numpy as jnp
import numpy as np
from jax.experimental import pallas as pl
from jax.experimental.pallas import tpu as pltpu


# ----------------------------- config (small) -----------------------------
HIDDEN = 32
INTERMEDIATE = 4 * HIDDEN
NUM_HEADS = 4
HEAD_DIM = HIDDEN // NUM_HEADS
NUM_LAYERS = 2
LAYER_NORM_EPS = 1e-6
BATCH = 2
SEQ = 8


def _layer_norm(x, w, b, eps):
    mean = jnp.mean(x, axis=-1, keepdims=True)
    var = jnp.mean((x - mean) ** 2, axis=-1, keepdims=True)
    return (x - mean) * jax.lax.rsqrt(var + eps) * w + b


def _gelu_tanh(x):
    # PyTorch F.gelu(approximate='tanh'); kept in f32 (v5e has no bf16 EUP).
    c = jnp.sqrt(2.0 / jnp.pi).astype(x.dtype)
    return 0.5 * x * (1.0 + jnp.tanh(c * (x + 0.044715 * x * x * x)))


# ----------------------------- fused encoder kernel -----------------------------
def siglip_encoder_kernel(
    x_ref,        # (1, S, D)  f32   input embeddings block (read only at layer 0)
    wqkv_ref,     # (1, D, 3D) bf16  [Wq*scale | Wk | Wv]
    wo_ref,       # (1, D, D)  bf16  output projection (split from QKV slab)
    fc1w_ref,     # (1, D, I)  bf16
    fc1b_ref,     # (1, 1, I)  f32
    fc2w_ref,     # (1, I, D)  bf16
    vec_ref,      # (1, 9, D)  f32   [bq*scale, bk, bv, bo, ln1_w, ln1_b, ln2_w, ln2_b, fc2_b]
    out_ref,      # (1, S, D)  f32   resident activation / final output block
    *, num_heads, head_dim, eps,
):
    _, S, D = out_ref.shape
    N = S                       # tokens in this batch block
    bf16 = jnp.bfloat16

    # Layer 0 (per batch block): seed the resident activation from the input.
    @pl.when(pl.program_id(1) == 0)
    def _():
        out_ref[...] = x_ref[...]

    h_res = out_ref[...].reshape(N, D)            # (S, D) f32 resident activation

    vecs = vec_ref[0]                             # (9, D) f32
    bq, bk, bv, bo = vecs[0:1], vecs[1:2], vecs[2:3], vecs[3:4]
    ln1_w, ln1_b = vecs[4:5], vecs[5:6]
    ln2_w, ln2_b = vecs[6:7], vecs[7:8]
    fc2_b = vecs[8:9]

    wqkv = wqkv_ref[0]                            # (D, 3D) bf16
    wo = wo_ref[0]                                # (D, D)  bf16

    # ---- LayerNorm 1 (f32) ----
    hn = _layer_norm(h_res, ln1_w, ln1_b, eps)

    # ---- Self attention: fused QKV matmul, bf16 operands, f32 accumulation ----
    qkv = jnp.dot(hn.astype(bf16), wqkv, preferred_element_type=jnp.float32)
    q = (qkv[:, 0:D] + bq).reshape(1, S, D).astype(bf16)        # scale folded into Wq/bq
    k = (qkv[:, D:2 * D] + bk).reshape(1, S, D).astype(bf16)
    v = (qkv[:, 2 * D:3 * D] + bv).reshape(1, S, D).astype(bf16)

    # Per-head: softmax(QK^T) V, then accumulate the output projection per head
    # (ctx_h @ Wo[h*hd:(h+1)*hd, :]) -- no lane-axis concat of head outputs.
    attn = jnp.zeros((N, D), jnp.float32)
    for hh in range(num_heads):
        sl = slice(hh * head_dim, (hh + 1) * head_dim)
        s = jnp.einsum("bqd,bkd->bqk", q[:, :, sl], k[:, :, sl],
                       preferred_element_type=jnp.float32)      # f32 scores
        m = jnp.max(s, axis=-1, keepdims=True)
        e = jnp.exp(s - m)                                       # f32 softmax (matches torch)
        p = e * pl.reciprocal(jnp.sum(e, axis=-1, keepdims=True), approx=True)
        ctx = jnp.einsum("bqk,bkd->bqd", p.astype(bf16), v[:, :, sl],
                         preferred_element_type=jnp.float32)     # (1, S, hd)
        attn = attn + jnp.dot(ctx.reshape(N, head_dim).astype(bf16), wo[sl, :],
                              preferred_element_type=jnp.float32)
    h1 = attn + bo + h_res

    # ---- LayerNorm 2 + MLP (bf16 matmuls, f32 elementwise/EUP math) ----
    h2 = _layer_norm(h1, ln2_w, ln2_b, eps)
    h2 = jnp.dot(h2.astype(bf16), fc1w_ref[0],
                 preferred_element_type=jnp.float32) + fc1b_ref[0]
    h2 = _gelu_tanh(h2)
    h2 = jnp.dot(h2.astype(bf16), fc2w_ref[0],
                 preferred_element_type=jnp.float32) + fc2_b

    # Write back into the resident activation block (HBM writeback happens once
    # per batch block, after the last layer).
    out_ref[...] = (h2 + h1).reshape(1, S, D).astype(out_ref.dtype)


# ----------------------------- weight packing -----------------------------
def pack_params(all_params):
    """Stack per-layer params along a leading layer axis; fuse QKV, fold the
    1/sqrt(head_dim) scale, and store matmul weights in bf16 (MXU-native)."""
    scale = float(HEAD_DIM) ** -0.5
    w_qkv, w_o, w_fc1, b_fc1, w_fc2, vec_d = [], [], [], [], [], []
    for p in all_params:
        w_qkv.append(jnp.concatenate(
            [p["wq"] * scale, p["wk"], p["wv"]], axis=1).astype(jnp.bfloat16))   # (D, 3D)
        w_o.append(p["wo"].astype(jnp.bfloat16))                                 # (D, D)
        w_fc1.append(p["fc1_w"].astype(jnp.bfloat16))                            # (D, I)
        b_fc1.append(p["fc1_b"][None, :])                                        # (1, I) f32
        w_fc2.append(p["fc2_w"].astype(jnp.bfloat16))                            # (I, D)
        vec_d.append(jnp.stack([
            p["bq"] * scale, p["bk"], p["bv"], p["bo"],
            p["ln1_w"], p["ln1_b"], p["ln2_w"], p["ln2_b"], p["fc2_b"],
        ], axis=0))                                                              # (9, D) f32
    return (jnp.stack(w_qkv), jnp.stack(w_o), jnp.stack(w_fc1),
            jnp.stack(b_fc1), jnp.stack(w_fc2), jnp.stack(vec_d))


# ----------------------------- wrapper -----------------------------
def siglip_encoder(x, all_params):
    """x: (B, S, D) float32. all_params: list of per-layer weight dicts."""
    w_qkv, w_o, w_fc1, b_fc1, w_fc2, vec_d = pack_params(all_params)
    L = w_qkv.shape[0]
    B, S, D = x.shape
    I = w_fc1.shape[-1]
    R = vec_d.shape[1]
    n_tok = B * S

    kernel = functools.partial(
        siglip_encoder_kernel,
        num_heads=NUM_HEADS, head_dim=HEAD_DIM, eps=LAYER_NORM_EPS,
    )

    # Advisory cost estimate so XLA schedules producers/consumers around the
    # fused encoder sensibly.
    flops = L * (2 * n_tok * D * 3 * D        # fused QKV
                 + 4 * B * S * S * D          # scores + PV
                 + 2 * n_tok * D * D          # output projection
                 + 4 * n_tok * D * I)         # fc1 + fc2
    transcendentals = L * (B * NUM_HEADS * S * S   # softmax exp
                           + n_tok * I             # gelu tanh
                           + 2 * n_tok)            # layernorm rsqrt
    bytes_accessed = (2 * B * S * D * 4
                      + L * (D * 3 * D + D * D + D * I + I * D) * 2   # bf16 weights
                      + L * (R * D + I) * 4)                          # f32 vectors

    return pl.pallas_call(
        kernel,
        out_shape=jax.ShapeDtypeStruct((B, S, D), x.dtype),
        grid_spec=pltpu.PrefetchScalarGridSpec(
            num_scalar_prefetch=0,
            grid=(B, L),                                  # batch (parallel), layer (sequential)
            in_specs=[
                pl.BlockSpec((1, S, D), lambda b, l: (b, 0, 0)),       # x (fetched once per batch)
                pl.BlockSpec((1, D, 3 * D), lambda b, l: (l, 0, 0)),   # fused QKV weights
                pl.BlockSpec((1, D, D), lambda b, l: (l, 0, 0)),       # Wo (split for lane alignment)
                pl.BlockSpec((1, D, I), lambda b, l: (l, 0, 0)),       # fc1_w
                pl.BlockSpec((1, 1, I), lambda b, l: (l, 0, 0)),       # fc1_b
                pl.BlockSpec((1, I, D), lambda b, l: (l, 0, 0)),       # fc2_w
                pl.BlockSpec((1, R, D), lambda b, l: (l, 0, 0)),       # packed D-wide vectors
            ],
            out_specs=pl.BlockSpec((1, S, D), lambda b, l: (b, 0, 0)),  # resident across layers
        ),
        compiler_params=pltpu.CompilerParams(
            dimension_semantics=("parallel", "arbitrary"),   # batch shardable, layers sequential
            vmem_limit_bytes=32 * 1024 * 1024,               # raise further at real sizes
        ),
        cost_estimate=pl.CostEstimate(
            flops=flops, transcendentals=transcendentals, bytes_accessed=bytes_accessed),
    )(x, w_qkv, w_o, w_fc1, b_fc1, w_fc2, vec_d)


# ----------------------------- reference (pure JAX, f32) -----------------------------
def _ref_layer(x, p):
    def ln(v, w, b):
        mu = v.mean(-1, keepdims=True)
        var = ((v - mu) ** 2).mean(-1, keepdims=True)
        return (v - mu) / jnp.sqrt(var + LAYER_NORM_EPS) * w + b

    B, S, D = x.shape
    res = x
    h = ln(x, p["ln1_w"], p["ln1_b"])
    q = h @ p["wq"] + p["bq"]
    k = h @ p["wk"] + p["bk"]
    v = h @ p["wv"] + p["bv"]
    q = q.reshape(B, S, NUM_HEADS, HEAD_DIM).transpose(0, 2, 1, 3)
    k = k.reshape(B, S, NUM_HEADS, HEAD_DIM).transpose(0, 2, 1, 3)
    v = v.reshape(B, S, NUM_HEADS, HEAD_DIM).transpose(0, 2, 1, 3)
    scores = jnp.einsum("bhqd,bhkd->bhqk", q, k) * (HEAD_DIM ** -0.5)
    p_attn = jax.nn.softmax(scores.astype(jnp.float32), axis=-1)
    ctx = jnp.einsum("bhqk,bhkd->bhqd", p_attn, v)
    ctx = ctx.transpose(0, 2, 1, 3).reshape(B, S, D)
    attn_out = ctx @ p["wo"] + p["bo"]
    h = attn_out + res
    res = h
    h2 = ln(h, p["ln2_w"], p["ln2_b"])
    h2 = h2 @ p["fc1_w"] + p["fc1_b"]
    h2 = _gelu_tanh(h2)
    h2 = h2 @ p["fc2_w"] + p["fc2_b"]
    return h2 + res


def _ref_encoder(x, all_params):
    h = x
    for p in all_params:
        h = _ref_layer(h, p)
    return h


# ----------------------------- param init -----------------------------
def init_params(key):
    all_params = []
    for _ in range(NUM_LAYERS):
        keys = jax.random.split(key, 8)
        key = keys[-1]
        std = 0.02
        p = {
            # Linear weights stored pre-transposed: (in, out) so kernel does x @ W + b.
            "wq": jax.random.normal(keys[0], (HIDDEN, HIDDEN), jnp.float32) * std,
            "bq": jnp.zeros((HIDDEN,), jnp.float32),
            "wk": jax.random.normal(keys[1], (HIDDEN, HIDDEN), jnp.float32) * std,
            "bk": jnp.zeros((HIDDEN,), jnp.float32),
            "wv": jax.random.normal(keys[2], (HIDDEN, HIDDEN), jnp.float32) * std,
            "bv": jnp.zeros((HIDDEN,), jnp.float32),
            "wo": jax.random.normal(keys[3], (HIDDEN, HIDDEN), jnp.float32) * std,
            "bo": jnp.zeros((HIDDEN,), jnp.float32),
            "ln1_w": jnp.ones((HIDDEN,), jnp.float32),
            "ln1_b": jnp.zeros((HIDDEN,), jnp.float32),
            "ln2_w": jnp.ones((HIDDEN,), jnp.float32),
            "ln2_b": jnp.zeros((HIDDEN,), jnp.float32),
            "fc1_w": jax.random.normal(keys[4], (HIDDEN, INTERMEDIATE), jnp.float32) * std,
            "fc1_b": jnp.zeros((INTERMEDIATE,), jnp.float32),
            "fc2_w": jax.random.normal(keys[5], (INTERMEDIATE, HIDDEN), jnp.float32) * std,
            "fc2_b": jnp.zeros((HIDDEN,), jnp.float32),
        }
        all_params.append(p)
    return all_params


if __name__ == "__main__":
    key = jax.random.PRNGKey(0)
    k_x, k_p = jax.random.split(key)
    x = jax.random.normal(k_x, (BATCH, SEQ, HIDDEN), jnp.float32)
    params = init_params(k_p)

    # f32 reference (computed first).
    ref = _ref_encoder(x, params)

    out = siglip_encoder(x, params)
    out = jax.block_until_ready(out)

    # Tolerance loosened vs the pure-f32 version: the kernel uses bf16 MXU
    # operands (f32 accumulation) and an approx-reciprocal softmax per the
    # performance review; the f32 reference stays exact.
    np.testing.assert_allclose(np.asarray(out), np.asarray(ref), rtol=2e-2, atol=2e-2)

    # attention_dropout = 0.0 -> dropout is identity; omitted from the kernel.
    print("KERNEL_OK")
</pallas_src>

<mosaic_0001>
module attributes {stable_mosaic.version = 11 : i64} {
  func.func @siglip_encoder_kernel(%arg0: i32, %arg1: i32, %arg2: memref<1x8x32xf32, #tpu.memory_space<vmem>>, %arg3: memref<1x32x96xbf16, #tpu.memory_space<vmem>>, %arg4: memref<1x32x32xbf16, #tpu.memory_space<vmem>>, %arg5: memref<1x32x128xbf16, #tpu.memory_space<vmem>>, %arg6: memref<1x1x128xf32, #tpu.memory_space<vmem>>, %arg7: memref<1x128x32xbf16, #tpu.memory_space<vmem>>, %arg8: memref<1x9x32xf32, #tpu.memory_space<vmem>>, %arg9: memref<1x8x32xf32, #tpu.memory_space<vmem>>) attributes {dimension_semantics = [#tpu.dimension_semantics<parallel>, #tpu.dimension_semantics<arbitrary>], iteration_bounds = array<i64: 2, 2>, scalar_prefetch = 0 : i64, scratch_operands = 0 : i64, tpu.core_type = #tpu.core_type<tc>, window_params = [{transform_indices = @transform_0, window_bounds = array<i64: 1, 8, 32>}, {transform_indices = @transform_1, window_bounds = array<i64: 1, 32, 96>}, {transform_indices = @transform_2, window_bounds = array<i64: 1, 32, 32>}, {transform_indices = @transform_3, window_bounds = array<i64: 1, 32, 128>}, {transform_indices = @transform_4, window_bounds = array<i64: 1, 1, 128>}, {transform_indices = @transform_5, window_bounds = array<i64: 1, 128, 32>}, {transform_indices = @transform_6, window_bounds = array<i64: 1, 9, 32>}, {transform_indices = @transform_7, window_bounds = array<i64: 1, 8, 32>}]} {
    %c0_i32 = arith.constant 0 : i32
    %0 = arith.cmpi eq, %arg1, %c0_i32 : i32
    %1 = arith.extui %0 : i1 to i32
    %c0_i32_0 = arith.constant 0 : i32
    %2 = arith.cmpi ne, %1, %c0_i32_0 : i32
    scf.if %2 {
      %c0_61 = arith.constant 0 : index
      %c0_62 = arith.constant 0 : index
      %c0_63 = arith.constant 0 : index
      %200 = vector.load %arg2[%c0_61, %c0_62, %c0_63] : memref<1x8x32xf32, #tpu.memory_space<vmem>>, vector<1x8x32xf32>
      %c0_64 = arith.constant 0 : index
      %c0_65 = arith.constant 0 : index
      %c0_66 = arith.constant 0 : index
      %201 = vector.load %arg9[%c0_64, %c0_65, %c0_66] : memref<1x8x32xf32, #tpu.memory_space<vmem>>, vector<1x8x32xf32>
      tpu.vector_store %arg9[%c0_64, %c0_65, %c0_66], %200 {strides = array<i32>} : memref<1x8x32xf32, #tpu.memory_space<vmem>>, vector<1x8x32xf32>,
    } else {
    }
    %c0 = arith.constant 0 : index
    %c0_1 = arith.constant 0 : index
    %c0_2 = arith.constant 0 : index
    %3 = vector.load %arg9[%c0, %c0_1, %c0_2] : memref<1x8x32xf32, #tpu.memory_space<vmem>>, vector<1x8x32xf32>
    %4 = vector.shape_cast %3 : vector<1x8x32xf32> to vector<8x32xf32>
    %c0_3 = arith.constant 0 : index
    %c0_4 = arith.constant 0 : index
    %c0_5 = arith.constant 0 : index
    %5 = vector.load %arg8[%c0_3, %c0_4, %c0_5] : memref<1x9x32xf32, #tpu.memory_space<vmem>>, vector<1x9x32xf32>
    %6 = vector.shape_cast %5 : vector<1x9x32xf32> to vector<9x32xf32>
    %7 = vector.extract_strided_slice %6 {offsets = [0, 0], sizes = [1, 32], strides = [1, 1]} : vector<9x32xf32> to vector<1x32xf32>
    %8 = vector.extract_strided_slice %6 {offsets = [1, 0], sizes = [1, 32], strides = [1, 1]} : vector<9x32xf32> to vector<1x32xf32>
    %9 = vector.extract_strided_slice %6 {offsets = [2, 0], sizes = [1, 32], strides = [1, 1]} : vector<9x32xf32> to vector<1x32xf32>
    %10 = vector.extract_strided_slice %6 {offsets = [3, 0], sizes = [1, 32], strides = [1, 1]} : vector<9x32xf32> to vector<1x32xf32>
    %11 = vector.extract_strided_slice %6 {offsets = [4, 0], sizes = [1, 32], strides = [1, 1]} : vector<9x32xf32> to vector<1x32xf32>
    %12 = vector.extract_strided_slice %6 {offsets = [5, 0], sizes = [1, 32], strides = [1, 1]} : vector<9x32xf32> to vector<1x32xf32>
    %13 = vector.extract_strided_slice %6 {offsets = [6, 0], sizes = [1, 32], strides = [1, 1]} : vector<9x32xf32> to vector<1x32xf32>
    %14 = vector.extract_strided_slice %6 {offsets = [7, 0], sizes = [1, 32], strides = [1, 1]} : vector<9x32xf32> to vector<1x32xf32>
    %15 = vector.extract_strided_slice %6 {offsets = [8, 0], sizes = [1, 32], strides = [1, 1]} : vector<9x32xf32> to vector<1x32xf32>
    %c0_6 = arith.constant 0 : index
    %c0_7 = arith.constant 0 : index
    %c0_8 = arith.constant 0 : index
    %16 = vector.load %arg3[%c0_6, %c0_7, %c0_8] : memref<1x32x96xbf16, #tpu.memory_space<vmem>>, vector<1x32x96xbf16>
    %17 = vector.shape_cast %16 : vector<1x32x96xbf16> to vector<32x96xbf16>
    %c0_9 = arith.constant 0 : index
    %c0_10 = arith.constant 0 : index
    %c0_11 = arith.constant 0 : index
    %18 = vector.load %arg4[%c0_9, %c0_10, %c0_11] : memref<1x32x32xbf16, #tpu.memory_space<vmem>>, vector<1x32x32xbf16>
    %19 = vector.shape_cast %18 : vector<1x32x32xbf16> to vector<32x32xbf16>
    %cst = arith.constant dense<0.000000e+00> : vector<8xf32>
    %20 = vector.multi_reduction <add>, %4, %cst [1] : vector<8x32xf32> to vector<8xf32>
    %21 = vector.shape_cast %20 : vector<8xf32> to vector<8x1xf32>
    %cst_12 = arith.constant 3.200000e+01 : f32
    %22 = vector.broadcast %cst_12 : f32 to vector<8x1xf32>
    %23 = arith.divf %21, %22 : vector<8x1xf32>
    %24 = vector.broadcast %23 : vector<8x1xf32> to vector<8x32xf32>
    %25 = arith.subf %4, %24 : vector<8x32xf32>
    %26 = arith.mulf %25, %25 : vector<8x32xf32>
    %cst_13 = arith.constant dense<0.000000e+00> : vector<8xf32>
    %27 = vector.multi_reduction <add>, %26, %cst_13 [1] : vector<8x32xf32> to vector<8xf32>
    %28 = vector.shape_cast %27 : vector<8xf32> to vector<8x1xf32>
    %cst_14 = arith.constant 3.200000e+01 : f32
    %29 = vector.broadcast %cst_14 : f32 to vector<8x1xf32>
    %30 = arith.divf %28, %29 : vector<8x1xf32>
    %31 = vector.broadcast %23 : vector<8x1xf32> to vector<8x32xf32>
    %32 = arith.subf %4, %31 : vector<8x32xf32>
    %cst_15 = arith.constant 9.99999997E-7 : f32
    %33 = vector.broadcast %cst_15 : f32 to vector<8x1xf32>
    %34 = arith.addf %30, %33 : vector<8x1xf32>
    %35 = math.rsqrt %34 : vector<8x1xf32>
    %36 = vector.broadcast %35 : vector<8x1xf32> to vector<8x32xf32>
    %37 = arith.mulf %32, %36 : vector<8x32xf32>
    %38 = vector.broadcast %11 : vector<1x32xf32> to vector<8x32xf32>
    %39 = arith.mulf %37, %38 : vector<8x32xf32>
    %40 = vector.broadcast %12 : vector<1x32xf32> to vector<8x32xf32>
    %41 = arith.addf %39, %40 : vector<8x32xf32>
    %42 = arith.truncf %41 : vector<8x32xf32> to vector<8x32xbf16>
    %cst_16 = arith.constant dense<0.000000e+00> : vector<8x96xf32>
    %43 = tpu.matmul %42, %17, %cst_16 {dimension_numbers = #tpu.dot_dimension_numbers<[1], [0], [0], [1], [0, 0, 1, 1], [], []>} : vector<8x32xbf16>, vector<32x96xbf16>, vector<8x96xf32> -> vector<8x96xf32>
    %44 = vector.extract_strided_slice %43 {offsets = [0, 0], sizes = [8, 32], strides = [1, 1]} : vector<8x96xf32> to vector<8x32xf32>
    %45 = vector.broadcast %7 : vector<1x32xf32> to vector<8x32xf32>
    %46 = arith.addf %44, %45 : vector<8x32xf32>
    %47 = vector.shape_cast %46 : vector<8x32xf32> to vector<1x8x32xf32>
    %48 = arith.truncf %47 : vector<1x8x32xf32> to vector<1x8x32xbf16>
    %49 = vector.extract_strided_slice %43 {offsets = [0, 32], sizes = [8, 32], strides = [1, 1]} : vector<8x96xf32> to vector<8x32xf32>
    %50 = vector.broadcast %8 : vector<1x32xf32> to vector<8x32xf32>
    %51 = arith.addf %49, %50 : vector<8x32xf32>
    %52 = vector.shape_cast %51 : vector<8x32xf32> to vector<1x8x32xf32>
    %53 = arith.truncf %52 : vector<1x8x32xf32> to vector<1x8x32xbf16>
    %54 = vector.extract_strided_slice %43 {offsets = [0, 64], sizes = [8, 32], strides = [1, 1]} : vector<8x96xf32> to vector<8x32xf32>
    %55 = vector.broadcast %9 : vector<1x32xf32> to vector<8x32xf32>
    %56 = arith.addf %54, %55 : vector<8x32xf32>
    %57 = vector.shape_cast %56 : vector<8x32xf32> to vector<1x8x32xf32>
    %58 = arith.truncf %57 : vector<1x8x32xf32> to vector<1x8x32xbf16>
    %cst_17 = arith.constant 0.000000e+00 : f32
    %59 = vector.broadcast %cst_17 : f32 to vector<8x32xf32>
    %60 = vector.extract_strided_slice %48 {offsets = [0, 0, 0], sizes = [1, 8, 8], strides = [1, 1, 1]} : vector<1x8x32xbf16> to vector<1x8x8xbf16>
    %61 = vector.extract_strided_slice %53 {offsets = [0, 0, 0], sizes = [1, 8, 8], strides = [1, 1, 1]} : vector<1x8x32xbf16> to vector<1x8x8xbf16>
    "tpu.trace_start"() <{level = 10 : i32, message = "bqd,bkd->bqk"}> : () -> ()
    %cst_18 = arith.constant dense<0.000000e+00> : vector<1x8x8xf32>
    %62 = tpu.matmul %60, %61, %cst_18 {dimension_numbers = #tpu.dot_dimension_numbers<[2], [2], [1], [1], [0, 0, 0, 1, 1, 1], [0], [0]>} : vector<1x8x8xbf16>, vector<1x8x8xbf16>, vector<1x8x8xf32> -> vector<1x8x8xf32>
    "tpu.trace_stop"() : () -> ()
    %cst_19 = arith.constant dense<0xFF800000> : vector<1x8xf32>
    %63 = vector.multi_reduction <maximumf>, %62, %cst_19 [2] : vector<1x8x8xf32> to vector<1x8xf32>
    %64 = vector.shape_cast %63 : vector<1x8xf32> to vector<1x8x1xf32>
    %65 = vector.broadcast %64 : vector<1x8x1xf32> to vector<1x8x8xf32>
    %66 = arith.subf %62, %65 : vector<1x8x8xf32>
    %67 = math.exp %66 : vector<1x8x8xf32>
    %cst_20 = arith.constant dense<0.000000e+00> : vector<1x8xf32>
    %68 = vector.multi_reduction <add>, %67, %cst_20 [2] : vector<1x8x8xf32> to vector<1x8xf32>
    %69 = vector.shape_cast %68 : vector<1x8xf32> to vector<1x8x1xf32>
    %70 = tpu.reciprocal %69 {approx = true} : vector<1x8x1xf32> -> vector<1x8x1xf32>
    %71 = vector.broadcast %70 : vector<1x8x1xf32> to vector<1x8x8xf32>
    %72 = arith.mulf %67, %71 : vector<1x8x8xf32>
    %73 = arith.truncf %72 : vector<1x8x8xf32> to vector<1x8x8xbf16>
    %74 = vector.extract_strided_slice %58 {offsets = [0, 0, 0], sizes = [1, 8, 8], strides = [1, 1, 1]} : vector<1x8x32xbf16> to vector<1x8x8xbf16>
    "tpu.trace_start"() <{level = 10 : i32, message = "bqk,bkd->bqd"}> : () -> ()
    %cst_21 = arith.constant dense<0.000000e+00> : vector<1x8x8xf32>
    %75 = tpu.matmul %73, %74, %cst_21 {dimension_numbers = #tpu.dot_dimension_numbers<[2], [1], [1], [2], [0, 0, 0, 1, 1, 2], [0], [0]>} : vector<1x8x8xbf16>, vector<1x8x8xbf16>, vector<1x8x8xf32> -> vector<1x8x8xf32>
    "tpu.trace_stop"() : () -> ()
    %76 = vector.shape_cast %75 : vector<1x8x8xf32> to vector<8x8xf32>
    %77 = arith.truncf %76 : vector<8x8xf32> to vector<8x8xbf16>
    %78 = vector.extract_strided_slice %19 {offsets = [0, 0], sizes = [8, 32], strides = [1, 1]} : vector<32x32xbf16> to vector<8x32xbf16>
    %cst_22 = arith.constant dense<0.000000e+00> : vector<8x32xf32>
    %79 = tpu.matmul %77, %78, %cst_22 {dimension_numbers = #tpu.dot_dimension_numbers<[1], [0], [0], [1], [0, 0, 1, 1], [], []>} : vector<8x8xbf16>, vector<8x32xbf16>, vector<8x32xf32> -> vector<8x32xf32>
    %80 = arith.addf %59, %79 : vector<8x32xf32>
    %81 = vector.extract_strided_slice %48 {offsets = [0, 0, 8], sizes = [1, 8, 8], strides = [1, 1, 1]} : vector<1x8x32xbf16> to vector<1x8x8xbf16>
    %82 = vector.extract_strided_slice %53 {offsets = [0, 0, 8], sizes = [1, 8, 8], strides = [1, 1, 1]} : vector<1x8x32xbf16> to vector<1x8x8xbf16>
    "tpu.trace_start"() <{level = 10 : i32, message = "bqd,bkd->bqk"}> : () -> ()
    %cst_23 = arith.constant dense<0.000000e+00> : vector<1x8x8xf32>
    %83 = tpu.matmul %81, %82, %cst_23 {dimension_numbers = #tpu.dot_dimension_numbers<[2], [2], [1], [1], [0, 0, 0, 1, 1, 1], [0], [0]>} : vector<1x8x8xbf16>, vector<1x8x8xbf16>, vector<1x8x8xf32> -> vector<1x8x8xf32>
    "tpu.trace_stop"() : () -> ()
    %cst_24 = arith.constant dense<0xFF800000> : vector<1x8xf32>
    %84 = vector.multi_reduction <maximumf>, %83, %cst_24 [2] : vector<1x8x8xf32> to vector<1x8xf32>
    %85 = vector.shape_cast %84 : vector<1x8xf32> to vector<1x8x1xf32>
    %86 = vector.broadcast %85 : vector<1x8x1xf32> to vector<1x8x8xf32>
    %87 = arith.subf %83, %86 : vector<1x8x8xf32>
    %88 = math.exp %87 : vector<1x8x8xf32>
    %cst_25 = arith.constant dense<0.000000e+00> : vector<1x8xf32>
    %89 = vector.multi_reduction <add>, %88, %cst_25 [2] : vector<1x8x8xf32> to vector<1x8xf32>
    %90 = vector.shape_cast %89 : vector<1x8xf32> to vector<1x8x1xf32>
    %91 = tpu.reciprocal %90 {approx = true} : vector<1x8x1xf32> -> vector<1x8x1xf32>
    %92 = vector.broadcast %91 : vector<1x8x1xf32> to vector<1x8x8xf32>
    %93 = arith.mulf %88, %92 : vector<1x8x8xf32>
    %94 = arith.truncf %93 : vector<1x8x8xf32> to vector<1x8x8xbf16>
    %95 = vector.extract_strided_slice %58 {offsets = [0, 0, 8], sizes = [1, 8, 8], strides = [1, 1, 1]} : vector<1x8x32xbf16> to vector<1x8x8xbf16>
    "tpu.trace_start"() <{level = 10 : i32, message = "bqk,bkd->bqd"}> : () -> ()
    %cst_26 = arith.constant dense<0.000000e+00> : vector<1x8x8xf32>
    %96 = tpu.matmul %94, %95, %cst_26 {dimension_numbers = #tpu.dot_dimension_numbers<[2], [1], [1], [2], [0, 0, 0, 1, 1, 2], [0], [0]>} : vector<1x8x8xbf16>, vector<1x8x8xbf16>, vector<1x8x8xf32> -> vector<1x8x8xf32>
    "tpu.trace_stop"() : () -> ()
    %97 = vector.shape_cast %96 : vector<1x8x8xf32> to vector<8x8xf32>
    %98 = arith.truncf %97 : vector<8x8xf32> to vector<8x8xbf16>
    %99 = vector.extract_strided_slice %19 {offsets = [8, 0], sizes = [8, 32], strides = [1, 1]} : vector<32x32xbf16> to vector<8x32xbf16>
    %cst_27 = arith.constant dense<0.000000e+00> : vector<8x32xf32>
    %100 = tpu.matmul %98, %99, %cst_27 {dimension_numbers = #tpu.dot_dimension_numbers<[1], [0], [0], [1], [0, 0, 1, 1], [], []>} : vector<8x8xbf16>, vector<8x32xbf16>, vector<8x32xf32> -> vector<8x32xf32>
    %101 = arith.addf %80, %100 : vector<8x32xf32>
    %102 = vector.extract_strided_slice %48 {offsets = [0, 0, 16], sizes = [1, 8, 8], strides = [1, 1, 1]} : vector<1x8x32xbf16> to vector<1x8x8xbf16>
    %103 = vector.extract_strided_slice %53 {offsets = [0, 0, 16], sizes = [1, 8, 8], strides = [1, 1, 1]} : vector<1x8x32xbf16> to vector<1x8x8xbf16>
    "tpu.trace_start"() <{level = 10 : i32, message = "bqd,bkd->bqk"}> : () -> ()
    %cst_28 = arith.constant dense<0.000000e+00> : vector<1x8x8xf32>
    %104 = tpu.matmul %102, %103, %cst_28 {dimension_numbers = #tpu.dot_dimension_numbers<[2], [2], [1], [1], [0, 0, 0, 1, 1, 1], [0], [0]>} : vector<1x8x8xbf16>, vector<1x8x8xbf16>, vector<1x8x8xf32> -> vector<1x8x8xf32>
    "tpu.trace_stop"() : () -> ()
    %cst_29 = arith.constant dense<0xFF800000> : vector<1x8xf32>
    %105 = vector.multi_reduction <maximumf>, %104, %cst_29 [2] : vector<1x8x8xf32> to vector<1x8xf32>
    %106 = vector.shape_cast %105 : vector<1x8xf32> to vector<1x8x1xf32>
    %107 = vector.broadcast %106 : vector<1x8x1xf32> to vector<1x8x8xf32>
    %108 = arith.subf %104, %107 : vector<1x8x8xf32>
    %109 = math.exp %108 : vector<1x8x8xf32>
    %cst_30 = arith.constant dense<0.000000e+00> : vector<1x8xf32>
    %110 = vector.multi_reduction <add>, %109, %cst_30 [2] : vector<1x8x8xf32> to vector<1x8xf32>
    %111 = vector.shape_cast %110 : vector<1x8xf32> to vector<1x8x1xf32>
    %112 = tpu.reciprocal %111 {approx = true} : vector<1x8x1xf32> -> vector<1x8x1xf32>
    %113 = vector.broadcast %112 : vector<1x8x1xf32> to vector<1x8x8xf32>
    %114 = arith.mulf %109, %113 : vector<1x8x8xf32>
    %115 = arith.truncf %114 : vector<1x8x8xf32> to vector<1x8x8xbf16>
    %116 = vector.extract_strided_slice %58 {offsets = [0, 0, 16], sizes = [1, 8, 8], strides = [1, 1, 1]} : vector<1x8x32xbf16> to vector<1x8x8xbf16>
    "tpu.trace_start"() <{level = 10 : i32, message = "bqk,bkd->bqd"}> : () -> ()
    %cst_31 = arith.constant dense<0.000000e+00> : vector<1x8x8xf32>
    %117 = tpu.matmul %115, %116, %cst_31 {dimension_numbers = #tpu.dot_dimension_numbers<[2], [1], [1], [2], [0, 0, 0, 1, 1, 2], [0], [0]>} : vector<1x8x8xbf16>, vector<1x8x8xbf16>, vector<1x8x8xf32> -> vector<1x8x8xf32>
    "tpu.trace_stop"() : () -> ()
    %118 = vector.shape_cast %117 : vector<1x8x8xf32> to vector<8x8xf32>
    %119 = arith.truncf %118 : vector<8x8xf32> to vector<8x8xbf16>
    %120 = vector.extract_strided_slice %19 {offsets = [16, 0], sizes = [8, 32], strides = [1, 1]} : vector<32x32xbf16> to vector<8x32xbf16>
    %cst_32 = arith.constant dense<0.000000e+00> : vector<8x32xf32>
    %121 = tpu.matmul %119, %120, %cst_32 {dimension_numbers = #tpu.dot_dimension_numbers<[1], [0], [0], [1], [0, 0, 1, 1], [], []>} : vector<8x8xbf16>, vector<8x32xbf16>, vector<8x32xf32> -> vector<8x32xf32>
    %122 = arith.addf %101, %121 : vector<8x32xf32>
    %123 = vector.extract_strided_slice %48 {offsets = [0, 0, 24], sizes = [1, 8, 8], strides = [1, 1, 1]} : vector<1x8x32xbf16> to vector<1x8x8xbf16>
    %124 = vector.extract_strided_slice %53 {offsets = [0, 0, 24], sizes = [1, 8, 8], strides = [1, 1, 1]} : vector<1x8x32xbf16> to vector<1x8x8xbf16>
    "tpu.trace_start"() <{level = 10 : i32, message = "bqd,bkd->bqk"}> : () -> ()
    %cst_33 = arith.constant dense<0.000000e+00> : vector<1x8x8xf32>
    %125 = tpu.matmul %123, %124, %cst_33 {dimension_numbers = #tpu.dot_dimension_numbers<[2], [2], [1], [1], [0, 0, 0, 1, 1, 1], [0], [0]>} : vector<1x8x8xbf16>, vector<1x8x8xbf16>, vector<1x8x8xf32> -> vector<1x8x8xf32>
    "tpu.trace_stop"() : () -> ()
    %cst_34 = arith.constant dense<0xFF800000> : vector<1x8xf32>
    %126 = vector.multi_reduction <maximumf>, %125, %cst_34 [2] : vector<1x8x8xf32> to vector<1x8xf32>
    %127 = vector.shape_cast %126 : vector<1x8xf32> to vector<1x8x1xf32>
    %128 = vector.broadcast %127 : vector<1x8x1xf32> to vector<1x8x8xf32>
    %129 = arith.subf %125, %128 : vector<1x8x8xf32>
    %130 = math.exp %129 : vector<1x8x8xf32>
    %cst_35 = arith.constant dense<0.000000e+00> : vector<1x8xf32>
    %131 = vector.multi_reduction <add>, %130, %cst_35 [2] : vector<1x8x8xf32> to vector<1x8xf32>
    %132 = vector.shape_cast %131 : vector<1x8xf32> to vector<1x8x1xf32>
    %133 = tpu.reciprocal %132 {approx = true} : vector<1x8x1xf32> -> vector<1x8x1xf32>
    %134 = vector.broadcast %133 : vector<1x8x1xf32> to vector<1x8x8xf32>
    %135 = arith.mulf %130, %134 : vector<1x8x8xf32>
    %136 = arith.truncf %135 : vector<1x8x8xf32> to vector<1x8x8xbf16>
    %137 = vector.extract_strided_slice %58 {offsets = [0, 0, 24], sizes = [1, 8, 8], strides = [1, 1, 1]} : vector<1x8x32xbf16> to vector<1x8x8xbf16>
    "tpu.trace_start"() <{level = 10 : i32, message = "bqk,bkd->bqd"}> : () -> ()
    %cst_36 = arith.constant dense<0.000000e+00> : vector<1x8x8xf32>
    %138 = tpu.matmul %136, %137, %cst_36 {dimension_numbers = #tpu.dot_dimension_numbers<[2], [1], [1], [2], [0, 0, 0, 1, 1, 2], [0], [0]>} : vector<1x8x8xbf16>, vector<1x8x8xbf16>, vector<1x8x8xf32> -> vector<1x8x8xf32>
    "tpu.trace_stop"() : () -> ()
    %139 = vector.shape_cast %138 : vector<1x8x8xf32> to vector<8x8xf32>
    %140 = arith.truncf %139 : vector<8x8xf32> to vector<8x8xbf16>
    %141 = vector.extract_strided_slice %19 {offsets = [24, 0], sizes = [8, 32], strides = [1, 1]} : vector<32x32xbf16> to vector<8x32xbf16>
    %cst_37 = arith.constant dense<0.000000e+00> : vector<8x32xf32>
    %142 = tpu.matmul %140, %141, %cst_37 {dimension_numbers = #tpu.dot_dimension_numbers<[1], [0], [0], [1], [0, 0, 1, 1], [], []>} : vector<8x8xbf16>, vector<8x32xbf16>, vector<8x32xf32> -> vector<8x32xf32>
    %143 = arith.addf %122, %142 : vector<8x32xf32>
    %144 = vector.broadcast %10 : vector<1x32xf32> to vector<8x32xf32>
    %145 = arith.addf %143, %144 : vector<8x32xf32>
    %146 = arith.addf %145, %4 : vector<8x32xf32>
    %cst_38 = arith.constant dense<0.000000e+00> : vector<8xf32>
    %147 = vector.multi_reduction <add>, %146, %cst_38 [1] : vector<8x32xf32> to vector<8xf32>
    %148 = vector.shape_cast %147 : vector<8xf32> to vector<8x1xf32>
    %cst_39 = arith.constant 3.200000e+01 : f32
    %149 = vector.broadcast %cst_39 : f32 to vector<8x1xf32>
    %150 = arith.divf %148, %149 : vector<8x1xf32>
    %151 = vector.broadcast %150 : vector<8x1xf32> to vector<8x32xf32>
    %152 = arith.subf %146, %151 : vector<8x32xf32>
    %153 = arith.mulf %152, %152 : vector<8x32xf32>
    %cst_40 = arith.constant dense<0.000000e+00> : vector<8xf32>
    %154 = vector.multi_reduction <add>, %153, %cst_40 [1] : vector<8x32xf32> to vector<8xf32>
    %155 = vector.shape_cast %154 : vector<8xf32> to vector<8x1xf32>
    %cst_41 = arith.constant 3.200000e+01 : f32
    %156 = vector.broadcast %cst_41 : f32 to vector<8x1xf32>
    %157 = arith.divf %155, %156 : vector<8x1xf32>
    %158 = vector.broadcast %150 : vector<8x1xf32> to vector<8x32xf32>
    %159 = arith.subf %146, %158 : vector<8x32xf32>
    %cst_42 = arith.constant 9.99999997E-7 : f32
    %160 = vector.broadcast %cst_42 : f32 to vector<8x1xf32>
    %161 = arith.addf %157, %160 : vector<8x1xf32>
    %162 = math.rsqrt %161 : vector<8x1xf32>
    %163 = vector.broadcast %162 : vector<8x1xf32> to vector<8x32xf32>
    %164 = arith.mulf %159, %163 : vector<8x32xf32>
    %165 = vector.broadcast %13 : vector<1x32xf32> to vector<8x32xf32>
    %166 = arith.mulf %164, %165 : vector<8x32xf32>
    %167 = vector.broadcast %14 : vector<1x32xf32> to vector<8x32xf32>
    %168 = arith.addf %166, %167 : vector<8x32xf32>
    %169 = arith.truncf %168 : vector<8x32xf32> to vector<8x32xbf16>
    %c0_43 = arith.constant 0 : index
    %c0_44 = arith.constant 0 : index
    %c0_45 = arith.constant 0 : index
    %170 = vector.load %arg5[%c0_43, %c0_44, %c0_45] : memref<1x32x128xbf16, #tpu.memory_space<vmem>>, vector<1x32x128xbf16>
    %171 = vector.shape_cast %170 : vector<1x32x128xbf16> to vector<32x128xbf16>
    %cst_46 = arith.constant dense<0.000000e+00> : vector<8x128xf32>
    %172 = tpu.matmul %169, %171, %cst_46 {dimension_numbers = #tpu.dot_dimension_numbers<[1], [0], [0], [1], [0, 0, 1, 1], [], []>} : vector<8x32xbf16>, vector<32x128xbf16>, vector<8x128xf32> -> vector<8x128xf32>
    %c0_47 = arith.constant 0 : index
    %c0_48 = arith.constant 0 : index
    %c0_49 = arith.constant 0 : index
    %173 = vector.load %arg6[%c0_47, %c0_48, %c0_49] : memref<1x1x128xf32, #tpu.memory_space<vmem>>, vector<1x1x128xf32>
    %174 = vector.shape_cast %173 : vector<1x1x128xf32> to vector<1x128xf32>
    %175 = vector.broadcast %174 : vector<1x128xf32> to vector<8x128xf32>
    %176 = arith.addf %172, %175 : vector<8x128xf32>
    %cst_50 = arith.constant 0.636619746 : f32
    %177 = math.sqrt %cst_50 : f32
    %cst_51 = arith.constant 5.000000e-01 : f32
    %178 = vector.broadcast %cst_51 : f32 to vector<8x128xf32>
    %179 = arith.mulf %178, %176 : vector<8x128xf32>
    %cst_52 = arith.constant 4.471500e-02 : f32
    %180 = vector.broadcast %cst_52 : f32 to vector<8x128xf32>
    %181 = arith.mulf %180, %176 : vector<8x128xf32>
    %182 = arith.mulf %181, %176 : vector<8x128xf32>
    %183 = arith.mulf %182, %176 : vector<8x128xf32>
    %184 = arith.addf %176, %183 : vector<8x128xf32>
    %185 = vector.broadcast %177 : f32 to vector<8x128xf32>
    %186 = arith.mulf %185, %184 : vector<8x128xf32>
    %187 = math.tanh %186 : vector<8x128xf32>
    %cst_53 = arith.constant 1.000000e+00 : f32
    %188 = vector.broadcast %cst_53 : f32 to vector<8x128xf32>
    %189 = arith.addf %188, %187 : vector<8x128xf32>
    %190 = arith.mulf %179, %189 : vector<8x128xf32>
    %191 = arith.truncf %190 : vector<8x128xf32> to vector<8x128xbf16>
    %c0_54 = arith.constant 0 : index
    %c0_55 = arith.constant 0 : index
    %c0_56 = arith.constant 0 : index
    %192 = vector.load %arg7[%c0_54, %c0_55, %c0_56] : memref<1x128x32xbf16, #tpu.memory_space<vmem>>, vector<1x128x32xbf16>
    %193 = vector.shape_cast %192 : vector<1x128x32xbf16> to vector<128x32xbf16>
    %cst_57 = arith.constant dense<0.000000e+00> : vector<8x32xf32>
    %194 = tpu.matmul %191, %193, %cst_57 {dimension_numbers = #tpu.dot_dimension_numbers<[1], [0], [0], [1], [0, 0, 1, 1], [], []>} : vector<8x128xbf16>, vector<128x32xbf16>, vector<8x32xf32> -> vector<8x32xf32>
    %195 = vector.broadcast %15 : vector<1x32xf32> to vector<8x32xf32>
    %196 = arith.addf %194, %195 : vector<8x32xf32>
    %197 = arith.addf %196, %146 : vector<8x32xf32>
    %198 = vector.shape_cast %197 : vector<8x32xf32> to vector<1x8x32xf32>
    %c0_58 = arith.constant 0 : index
    %c0_59 = arith.constant 0 : index
    %c0_60 = arith.constant 0 : index
    %199 = vector.load %arg9[%c0_58, %c0_59, %c0_60] : memref<1x8x32xf32, #tpu.memory_space<vmem>>, vector<1x8x32xf32>
    tpu.vector_store %arg9[%c0_58, %c0_59, %c0_60], %198 {strides = array<i32>} : memref<1x8x32xf32, #tpu.memory_space<vmem>>, vector<1x8x32xf32>,
    return
  }
  func.func @transform_0(%arg0: i32, %arg1: i32) -> (i32, i32, i32) {
    %c0_i32 = arith.constant 0 : i32
    %c0_i32_0 = arith.constant 0 : i32
    %c0_i32_1 = arith.constant 0 : i32
    return %arg0, %c0_i32, %c0_i32_0 : i32, i32, i32
  }
  func.func @transform_1(%arg0: i32, %arg1: i32) -> (i32, i32, i32) {
    %c0_i32 = arith.constant 0 : i32
    %c0_i32_0 = arith.constant 0 : i32
    %c0_i32_1 = arith.constant 0 : i32
    return %arg1, %c0_i32, %c0_i32_0 : i32, i32, i32
  }
  func.func @transform_2(%arg0: i32, %arg1: i32) -> (i32, i32, i32) {
    %c0_i32 = arith.constant 0 : i32
    %c0_i32_0 = arith.constant 0 : i32
    %c0_i32_1 = arith.constant 0 : i32
    return %arg1, %c0_i32, %c0_i32_0 : i32, i32, i32
  }
  func.func @transform_3(%arg0: i32, %arg1: i32) -> (i32, i32, i32) {
    %c0_i32 = arith.constant 0 : i32
    %c0_i32_0 = arith.constant 0 : i32
    %c0_i32_1 = arith.constant 0 : i32
    return %arg1, %c0_i32, %c0_i32_0 : i32, i32, i32
  }
  func.func @transform_4(%arg0: i32, %arg1: i32) -> (i32, i32, i32) {
    %c0_i32 = arith.constant 0 : i32
    %c0_i32_0 = arith.constant 0 : i32
    %c0_i32_1 = arith.constant 0 : i32
    return %arg1, %c0_i32, %c0_i32_0 : i32, i32, i32
  }
  func.func @transform_5(%arg0: i32, %arg1: i32) -> (i32, i32, i32) {
    %c0_i32 = arith.constant 0 : i32
    %c0_i32_0 = arith.constant 0 : i32
    %c0_i32_1 = arith.constant 0 : i32
    return %arg1, %c0_i32, %c0_i32_0 : i32, i32, i32
  }
  func.func @transform_6(%arg0: i32, %arg1: i32) -> (i32, i32, i32) {
    %c0_i32 = arith.constant 0 : i32
    %c0_i32_0 = arith.constant 0 : i32
    %c0_i32_1 = arith.constant 0 : i32
    return %arg1, %c0_i32, %c0_i32_0 : i32, i32, i32
  }
  func.func @transform_7(%arg0: i32, %arg1: i32) -> (i32, i32, i32) {
    %c0_i32 = arith.constant 0 : i32
    %c0_i32_0 = arith.constant 0 : i32
    %c0_i32_1 = arith.constant 0 : i32
    return %arg0, %c0_i32, %c0_i32_0 : i32, i32, i32
  }
}

</mosaic_0001>

<llo_original>
// kernel: tpu_custom_call.1
$region0: #{tpu_custom_call.1}
  #allocation0 [shape = 'u32[]', space=smem, size = 0x4, offset = 0x4, fixed_abs, tag = 'smem constant byte address 0x4 - core index']
  #allocation1 [shape = 'u32[144,128]{1,0:T(1,128)}', space=vmem, size = 0x12000, scoped, tag = 'internal scratch']
  %s0 = inlined_call_operand.vmem [shape: f32[2,8,32], index: 0, kind: input, shape index: {}]
  %s1 = inlined_call_operand.vmem [shape: bf16[2,32,96], index: 1, kind: input, shape index: {}]
  %s2 = inlined_call_operand.vmem [shape: bf16[2,32,32], index: 2, kind: input, shape index: {}]
  %s3 = inlined_call_operand.vmem [shape: bf16[2,32,128], index: 3, kind: input, shape index: {}]
  %s4 = inlined_call_operand.vmem [shape: f32[2,1,128], index: 4, kind: input, shape index: {}]
  %s5 = inlined_call_operand.vmem [shape: bf16[2,128,32], index: 5, kind: input, shape index: {}]
  %s6 = inlined_call_operand.vmem [shape: f32[2,9,32], index: 6, kind: input, shape index: {}]
  %s7 = inlined_call_operand.hbm [shape: f32[2,8,32], index: 7, kind: output, shape index: {}]
  %s8 = sld [smem:[#allocation0]]
  $region65: #{tpu_custom_call.1} parent=0
    _
  %s10 = ssub.s32 1, %s8
  %s11 = scalar_select 0, %s10, %s8
  $region1: #{tpu_custom_call.1} parent=0
    #allocation2 [shape = 'u8[8192]{0}', space=vmem, size = 0x2000, scoped, tag = 'output window, operand 0']
    #allocation3 [shape = 's32[2]{0}', space=sflag, size = 0x8, scoped, tag = 'scoped memory for tpu_custom_call.1']
    %12 = vsyncpa [#allocation3], 0
    %s13 = scalar_lea.sflag [#allocation3], 1
    %14 = vsyncpa %s13, 0
    loop: start=0, step=1, limit=6
    $region2: #{tpu_custom_call.1} parent=1 // loop_pre_header
      _
    $region3: #{tpu_custom_call.1} parent=1 // loop_header
      %s16 = sphi 0, %s20
      %p17 = scmp.ge.s32.totalorder %s16, 6
      %s23 = sphi 0, %s35
      %s24 = sphi 0, %s31
      %s25 = sphi 0, %s23
      %s26 = sphi 0, %s24
      %s27 = sphi 0, %s25
      %s28 = sphi 0, %s26
      %s38 = sphi 0, %s40
      %s41 = sphi 0, %s38
      %s42 = sphi 0, %s41
      %s58 = sphi 0, %s42
      %s64 = sphi 0, %s66
      %s67 = sphi 0, %s64
      %s68 = sphi 0, %s67
      %s84 = sphi 0, %s68
      %s90 = sphi 0, %s92
      %s93 = sphi 0, %s90
      %s94 = sphi 0, %s93
      %s110 = sphi 0, %s94
      %s116 = sphi 0, %s118
      %s119 = sphi 0, %s116
      %s120 = sphi 0, %s119
      %s136 = sphi 0, %s120
      %s142 = sphi 0, %s144
      %s145 = sphi 0, %s142
      %s146 = sphi 0, %s145
      %s162 = sphi 0, %s146
      %s168 = sphi 0, %s170
      %s171 = sphi 0, %s168
      %s172 = sphi 0, %s171
      %s188 = sphi 0, %s172
      %s194 = sphi 0, %s196
      %s197 = sphi 0, %s194
      %s198 = sphi 0, %s197
      %s214 = sphi 0, %s198
      %s220 = sphi 0, %s222
      %s223 = sphi 0, %s220
      %s224 = sphi 0, %s223
      %s240 = sphi 0, %s224
    $region4: #{tpu_custom_call.1} parent=1 // loop_header_branch
      %19 = sbr.rel (%p17) target = $region8
    $region5: #{tpu_custom_call.1} parent=1 // loop_body
      %s21 = ssub.s32 %s16, 1
      %s22 = ssub.s32 %s16, 2
      %s29 = sadd.s32 1, %s24
      %p30 = scmp.ge.s32.totalorder %s29, 2
      %s31 = scalar_select %p30, 0, %s29
      %s32 = sadd.s32 1, %s23
      %s33 = scalar_select %p30, %s32, %s23
      %p34 = scmp.ge.s32.totalorder %s33, 2
      %s35 = scalar_select %p34, 0, %s33
      %s36 = ssub.s32 %s23, %s35
      %p37 = scmp.eq.s32.totalorder %s36, 0
      %s39 = sadd.s32 %s38, 1
      %s40 = scalar_select %p37, %s38, %s39
      %p43 = pneg %p37
      %p44 = scmp.eq.s32.totalorder %s16, 3
      %p45 = por %p43, %p44
      %p46 = scmp.ne.s32.totalorder %s38, %s41
      %p47 = scmp.eq.s32.totalorder %s16, 0
      %p48 = por %p46, %p47
      %p49 = scmp.ne.s32.totalorder %s38, %s41
      %p50 = scmp.eq.s32.totalorder %s21, 3
      %p51 = por %p49, %p50
      %p52 = scmp.ne.s32.totalorder %s41, %s42
      %p53 = scmp.eq.s32.totalorder %s21, 0
      %p54 = por %p52, %p53
      %p55 = scmp.ne.s32.totalorder %s41, %s42
      %p56 = scmp.eq.s32.totalorder %s22, 3
      %p57 = por %p55, %p56
      %p59 = scmp.ne.s32.totalorder %s42, %s58
      %p60 = scmp.eq.s32.totalorder %s22, 0
      %p61 = por %p59, %p60
      %s62 = ssub.s32 %s24, %s31
      %p63 = scmp.eq.s32.totalorder %s62, 0
      %s65 = sadd.s32 %s64, 1
      %s66 = scalar_select %p63, %s64, %s65
      %p69 = pneg %p63
      %p70 = scmp.eq.s32.totalorder %s16, 3
      %p71 = por %p69, %p70
      %p72 = scmp.ne.s32.totalorder %s64, %s67
      %p73 = scmp.eq.s32.totalorder %s16, 0
      %p74 = por %p72, %p73
      %p75 = scmp.ne.s32.totalorder %s64, %s67
      %p76 = scmp.eq.s32.totalorder %s21, 3
      %p77 = por %p75, %p76
      %p78 = scmp.ne.s32.totalorder %s67, %s68
      %p79 = scmp.eq.s32.totalorder %s21, 0
      %p80 = por %p78, %p79
      %p81 = scmp.ne.s32.totalorder %s67, %s68
      %p82 = scmp.eq.s32.totalorder %s22, 3
      %p83 = por %p81, %p82
      %p85 = scmp.ne.s32.totalorder %s68, %s84
      %p86 = scmp.eq.s32.totalorder %s22, 0
      %p87 = por %p85, %p86
      %s88 = ssub.s32 %s24, %s31
      %p89 = scmp.eq.s32.totalorder %s88, 0
      %s91 = sadd.s32 %s90, 1
      %s92 = scalar_select %p89, %s90, %s91
      %p95 = pneg %p89
      %p96 = scmp.eq.s32.totalorder %s16, 3
      %p97 = por %p95, %p96
      %p98 = scmp.ne.s32.totalorder %s90, %s93
      %p99 = scmp.eq.s32.totalorder %s16, 0
      %p100 = por %p98, %p99
      %p101 = scmp.ne.s32.totalorder %s90, %s93
      %p102 = scmp.eq.s32.totalorder %s21, 3
      %p103 = por %p101, %p102
      %p104 = scmp.ne.s32.totalorder %s93, %s94
      %p105 = scmp.eq.s32.totalorder %s21, 0
      %p106 = por %p104, %p105
      %p107 = scmp.ne.s32.totalorder %s93, %s94
      %p108 = scmp.eq.s32.totalorder %s22, 3
      %p109 = por %p107, %p108
      %p111 = scmp.ne.s32.totalorder %s94, %s110
      %p112 = scmp.eq.s32.totalorder %s22, 0
      %p113 = por %p111, %p112
      %s114 = ssub.s32 %s24, %s31
      %p115 = scmp.eq.s32.totalorder %s114, 0
      %s117 = sadd.s32 %s116, 1
      %s118 = scalar_select %p115, %s116, %s117
      %p121 = pneg %p115
      %p122 = scmp.eq.s32.totalorder %s16, 3
      %p123 = por %p121, %p122
      %p124 = scmp.ne.s32.totalorder %s116, %s119
      %p125 = scmp.eq.s32.totalorder %s16, 0
      %p126 = por %p124, %p125
      %p127 = scmp.ne.s32.totalorder %s116, %s119
      %p128 = scmp.eq.s32.totalorder %s21, 3
      %p129 = por %p127, %p128
      %p130 = scmp.ne.s32.totalorder %s119, %s120
      %p131 = scmp.eq.s32.totalorder %s21, 0
      %p132 = por %p130, %p131
      %p133 = scmp.ne.s32.totalorder %s119, %s120
      %p134 = scmp.eq.s32.totalorder %s22, 3
      %p135 = por %p133, %p134
      %p137 = scmp.ne.s32.totalorder %s120, %s136
      %p138 = scmp.eq.s32.totalorder %s22, 0
      %p139 = por %p137, %p138
      %s140 = ssub.s32 %s24, %s31
      %p141 = scmp.eq.s32.totalorder %s140, 0
      %s143 = sadd.s32 %s142, 1
      %s144 = scalar_select %p141, %s142, %s143
      %p147 = pneg %p141
      %p148 = scmp.eq.s32.totalorder %s16, 3
      %p149 = por %p147, %p148
      %p150 = scmp.ne.s32.totalorder %s142, %s145
      %p151 = scmp.eq.s32.totalorder %s16, 0
      %p152 = por %p150, %p151
      %p153 = scmp.ne.s32.totalorder %s142, %s145
      %p154 = scmp.eq.s32.totalorder %s21, 3
      %p155 = por %p153, %p154
      %p156 = scmp.ne.s32.totalorder %s145, %s146
      %p157 = scmp.eq.s32.totalorder %s21, 0
      %p158 = por %p156, %p157
      %p159 = scmp.ne.s32.totalorder %s145, %s146
      %p160 = scmp.eq.s32.totalorder %s22, 3
      %p161 = por %p159, %p160
      %p163 = scmp.ne.s32.totalorder %s146, %s162
      %p164 = scmp.eq.s32.totalorder %s22, 0
      %p165 = por %p163, %p164
      %s166 = ssub.s32 %s24, %s31
      %p167 = scmp.eq.s32.totalorder %s166, 0
      %s169 = sadd.s32 %s168, 1
      %s170 = scalar_select %p167, %s168, %s169
      %p173 = pneg %p167
      %p174 = scmp.eq.s32.totalorder %s16, 3
      %p175 = por %p173, %p174
      %p176 = scmp.ne.s32.totalorder %s168, %s171
      %p177 = scmp.eq.s32.totalorder %s16, 0
      %p178 = por %p176, %p177
      %p179 = scmp.ne.s32.totalorder %s168, %s171
      %p180 = scmp.eq.s32.totalorder %s21, 3
      %p181 = por %p179, %p180
      %p182 = scmp.ne.s32.totalorder %s171, %s172
      %p183 = scmp.eq.s32.totalorder %s21, 0
      %p184 = por %p182, %p183
      %p185 = scmp.ne.s32.totalorder %s171, %s172
      %p186 = scmp.eq.s32.totalorder %s22, 3
      %p187 = por %p185, %p186
      %p189 = scmp.ne.s32.totalorder %s172, %s188
      %p190 = scmp.eq.s32.totalorder %s22, 0
      %p191 = por %p189, %p190
      %s192 = ssub.s32 %s24, %s31
      %p193 = scmp.eq.s32.totalorder %s192, 0
      %s195 = sadd.s32 %s194, 1
      %s196 = scalar_select %p193, %s194, %s195
      %p199 = pneg %p193
      %p200 = scmp.eq.s32.totalorder %s16, 3
      %p201 = por %p199, %p200
      %p202 = scmp.ne.s32.totalorder %s194, %s197
      %p203 = scmp.eq.s32.totalorder %s16, 0
      %p204 = por %p202, %p203
      %p205 = scmp.ne.s32.totalorder %s194, %s197
      %p206 = scmp.eq.s32.totalorder %s21, 3
      %p207 = por %p205, %p206
      %p208 = scmp.ne.s32.totalorder %s197, %s198
      %p209 = scmp.eq.s32.totalorder %s21, 0
      %p210 = por %p208, %p209
      %p211 = scmp.ne.s32.totalorder %s197, %s198
      %p212 = scmp.eq.s32.totalorder %s22, 3
      %p213 = por %p211, %p212
      %p215 = scmp.ne.s32.totalorder %s198, %s214
      %p216 = scmp.eq.s32.totalorder %s22, 0
      %p217 = por %p215, %p216
      %s218 = ssub.s32 %s23, %s35
      %p219 = scmp.eq.s32.totalorder %s218, 0
      %s221 = sadd.s32 %s220, 1
      %s222 = scalar_select %p219, %s220, %s221
      %p225 = pneg %p219
      %p226 = scmp.eq.s32.totalorder %s16, 3
      %p227 = por %p225, %p226
      %p228 = scmp.ne.s32.totalorder %s220, %s223
      %p229 = scmp.eq.s32.totalorder %s16, 0
      %p230 = por %p228, %p229
      %p231 = scmp.ne.s32.totalorder %s220, %s223
      %p232 = scmp.eq.s32.totalorder %s21, 3
      %p233 = por %p231, %p232
      %p234 = scmp.ne.s32.totalorder %s223, %s224
      %p235 = scmp.eq.s32.totalorder %s21, 0
      %p236 = por %p234, %p235
      %p237 = scmp.ne.s32.totalorder %s223, %s224
      %p238 = scmp.eq.s32.totalorder %s22, 3
      %p239 = por %p237, %p238
      %p241 = scmp.ne.s32.totalorder %s224, %s240
      %p242 = scmp.eq.s32.totalorder %s22, 0
      %p243 = por %p241, %p242
      %p244 = scmp.le.s32.totalorder 1, %s16
      %p245 = scmp.lt.s32.totalorder %s16, 5
      %p246 = pnand %p244, %p245
      %p247 = pneg %p246
      // Predicated region
      $region9: #{tpu_custom_call.1} parent=5 // pred_check
        _
      $region10: #{tpu_custom_call.1} parent=5 // pred_check_branch
        %249 = sbr.rel (%p246) target = $region12
      $region11: #{tpu_custom_call.1} parent=5 // pred_region
        %s250 = ssub.s32 %s16, 1
      $region12: #{tpu_custom_call.1} parent=5 // pred_fallthru
        _
      %p251 = scmp.lt.s32.totalorder %s16, 4
      // Predicated region
      $region13: #{tpu_custom_call.1} parent=5 // pred_check
        %p252 = pneg %p251
      $region14: #{tpu_custom_call.1} parent=5 // pred_check_branch
        %254 = sbr.rel (%p252) target = $region16
      $region15: #{tpu_custom_call.1} parent=5 // pred_region
        // Predicated region
        $region17: #{tpu_custom_call.1} parent=15 // pred_check
          %p255 = pneg %p48
        $region18: #{tpu_custom_call.1} parent=15 // pred_check_branch
          %257 = sbr.rel (%p255) target = $region20
        $region19: #{tpu_custom_call.1} parent=15 // pred_region
          %p258 = scmp.lt.s32.totalorder %s23, 1
          %s259 = scalar_select %p258, %s23, 1
          %s260 = smul.addr %s259, 8
          %s261 = scalar_lea.vmem %s0, %s260
        $region20: #{tpu_custom_call.1} parent=15 // pred_fallthru
          _
        // Predicated region
        $region21: #{tpu_custom_call.1} parent=15 // pred_check
          %p262 = pneg %p74
        $region22: #{tpu_custom_call.1} parent=15 // pred_check_branch
          %264 = sbr.rel (%p262) target = $region24
        $region23: #{tpu_custom_call.1} parent=15 // pred_region
          %p265 = scmp.lt.s32.totalorder %s24, 1
          %s266 = scalar_select %p265, %s24, 1
          %s267 = smul.addr %s266, 4
          %s268 = smul.addr %s267, 4
          %s269 = scalar_lea.vmem %s1, %s268
        $region24: #{tpu_custom_call.1} parent=15 // pred_fallthru
          _
        // Predicated region
        $region25: #{tpu_custom_call.1} parent=15 // pred_check
          %p270 = pneg %p100
        $region26: #{tpu_custom_call.1} parent=15 // pred_check_branch
          %272 = sbr.rel (%p270) target = $region28
        $region27: #{tpu_custom_call.1} parent=15 // pred_region
          %p273 = scmp.lt.s32.totalorder %s24, 1
          %s274 = scalar_select %p273, %s24, 1
          %s275 = smul.addr %s274, 4
          %s276 = smul.addr %s275, 4
          %s277 = scalar_lea.vmem %s2, %s276
        $region28: #{tpu_custom_call.1} parent=15 // pred_fallthru
          _
        // Predicated region
        $region29: #{tpu_custom_call.1} parent=15 // pred_check
          %p278 = pneg %p126
        $region30: #{tpu_custom_call.1} parent=15 // pred_check_branch
          %280 = sbr.rel (%p278) target = $region32
        $region31: #{tpu_custom_call.1} parent=15 // pred_region
          %p281 = scmp.lt.s32.totalorder %s24, 1
          %s282 = scalar_select %p281, %s24, 1
          %s283 = smul.addr %s282, 4
          %s284 = smul.addr %s283, 4
          %s285 = scalar_lea.vmem %s3, %s284
        $region32: #{tpu_custom_call.1} parent=15 // pred_fallthru
          _
        // Predicated region
        $region33: #{tpu_custom_call.1} parent=15 // pred_check
          %p286 = pneg %p152
        $region34: #{tpu_custom_call.1} parent=15 // pred_check_branch
          %288 = sbr.rel (%p286) target = $region36
        $region35: #{tpu_custom_call.1} parent=15 // pred_region
          %p289 = scmp.lt.s32.totalorder %s24, 1
          %s290 = scalar_select %p289, %s24, 1
          %s291 = scalar_lea.vmem %s4, %s290
        $region36: #{tpu_custom_call.1} parent=15 // pred_fallthru
          _
        // Predicated region
        $region37: #{tpu_custom_call.1} parent=15 // pred_check
          %p292 = pneg %p178
        $region38: #{tpu_custom_call.1} parent=15 // pred_check_branch
          %294 = sbr.rel (%p292) target = $region40
        $region39: #{tpu_custom_call.1} parent=15 // pred_region
          %p295 = scmp.lt.s32.totalorder %s24, 1
          %s296 = scalar_select %p295, %s24, 1
          %s297 = smul.addr %s296, 16
          %s298 = smul.addr %s297, 4
          %s299 = scalar_lea.vmem %s5, %s298
        $region40: #{tpu_custom_call.1} parent=15 // pred_fallthru
          _
        // Predicated region
        $region41: #{tpu_custom_call.1} parent=15 // pred_check
          %p300 = pneg %p204
        $region42: #{tpu_custom_call.1} parent=15 // pred_check_branch
          %302 = sbr.rel (%p300) target = $region44
        $region43: #{tpu_custom_call.1} parent=15 // pred_region
          %p303 = scmp.lt.s32.totalorder %s24, 1
          %s304 = scalar_select %p303, %s24, 1
          %s305 = smul.addr %s304, 2
          %s306 = smul.addr %s305, 8
          %s307 = scalar_lea.vmem %s6, %s306
        $region44: #{tpu_custom_call.1} parent=15 // pred_fallthru
          _
      $region16: #{tpu_custom_call.1} parent=5 // pred_fallthru
        _
      %p308 = scmp.le.s32.totalorder 1, %s16
      %p309 = scmp.lt.s32.totalorder %s16, 5
      %p310 = pnand %p308, %p309
      %p311 = pneg %p310
      // Predicated region
      $region45: #{tpu_custom_call.1} parent=5 // pred_check
        _
      $region46: #{tpu_custom_call.1} parent=5 // pred_check_branch
        %313 = sbr.rel (%p310) target = $region48
      $region47: #{tpu_custom_call.1} parent=5 // pred_region
        %s314 = ssub.s32 %s16, 1
        %p315 = scmp.lt.s32.totalorder %s25, 1
        %s316 = scalar_select %p315, %s25, 1
        %s317 = smul.addr %s316, 8
        %s318 = scalar_lea.vmem %s0, %s317
        %p319 = pneg %p54
        %p320 = pneg %p51
        %p321 = scmp.lt.s32.totalorder %s26, 1
        %s322 = scalar_select %p321, %s26, 1
        %s323 = smul.addr %s322, 4
        %s324 = smul.addr %s323, 4
        %s325 = scalar_lea.vmem %s1, %s324
        %p326 = pneg %p80
        %p327 = pneg %p77
        %p328 = scmp.lt.s32.totalorder %s26, 1
        %s329 = scalar_select %p328, %s26, 1
        %s330 = smul.addr %s329, 4
        %s331 = smul.addr %s330, 4
        %s332 = scalar_lea.vmem %s2, %s331
        %p333 = pneg %p106
        %p334 = pneg %p103
        %p335 = scmp.lt.s32.totalorder %s26, 1
        %s336 = scalar_select %p335, %s26, 1
        %s337 = smul.addr %s336, 4
        %s338 = smul.addr %s337, 4
        %s339 = scalar_lea.vmem %s3, %s338
        %p340 = pneg %p132
        %p341 = pneg %p129
        %p342 = scmp.lt.s32.totalorder %s26, 1
        %s343 = scalar_select %p342, %s26, 1
        %s344 = scalar_lea.vmem %s4, %s343
        %p345 = pneg %p158
        %p346 = pneg %p155
        %p347 = scmp.lt.s32.totalorder %s26, 1
        %s348 = scalar_select %p347, %s26, 1
        %s349 = smul.addr %s348, 16
        %s350 = smul.addr %s349, 4
        %s351 = scalar_lea.vmem %s5, %s350
        %p352 = pneg %p184
        %p353 = pneg %p181
        %p354 = scmp.lt.s32.totalorder %s26, 1
        %s355 = scalar_select %p354, %s26, 1
        %s356 = smul.addr %s355, 2
        %s357 = smul.addr %s356, 8
        %s358 = scalar_lea.vmem %s6, %s357
        %p359 = pneg %p210
        %p360 = pneg %p207
        %p361 = pneg %p236
        %p362 = pneg %p233
        %s363 = sand.u32 %s223, 1
        %s364 = scalar_lea.sflag [#allocation3], %s363
        %s365 = sand.u32 %s223, 1
        %s366 = smul.addr %s365, 8
        %s367 = scalar_lea.vmem [#allocation2], %s366
        %p368 = scmp.lt.s32.totalorder %s25, 1
        %s369 = scalar_select %p368, %s25, 1
        %s370 = smul.addr %s369, 8
        %s371 = scalar_lea.vmem %s0, %s370
        %p372 = scmp.lt.s32.totalorder %s26, 1
        %s373 = scalar_select %p372, %s26, 1
        %s374 = smul.addr %s373, 4
        %s375 = smul.addr %s374, 4
        %s376 = scalar_lea.vmem %s1, %s375
        %p377 = scmp.lt.s32.totalorder %s26, 1
        %s378 = scalar_select %p377, %s26, 1
        %s379 = smul.addr %s378, 4
        %s380 = smul.addr %s379, 4
        %s381 = scalar_lea.vmem %s2, %s380
        %p382 = scmp.lt.s32.totalorder %s26, 1
        %s383 = scalar_select %p382, %s26, 1
        %s384 = smul.addr %s383, 4
        %s385 = smul.addr %s384, 4
        %s386 = scalar_lea.vmem %s3, %s385
        %p387 = scmp.lt.s32.totalorder %s26, 1
        %s388 = scalar_select %p387, %s26, 1
        %s389 = scalar_lea.vmem %s4, %s388
        %p390 = scmp.lt.s32.totalorder %s26, 1
        %s391 = scalar_select %p390, %s26, 1
        %s392 = smul.addr %s391, 16
        %s393 = smul.addr %s392, 4
        %s394 = scalar_lea.vmem %s5, %s393
        %p395 = scmp.lt.s32.totalorder %s26, 1
        %s396 = scalar_select %p395, %s26, 1
        %s397 = smul.addr %s396, 2
        %s398 = smul.addr %s397, 8
        %s399 = scalar_lea.vmem %s6, %s398
        %p401 = scmp.eq.s32.totalorder %s26, 0
        // Predicated region
        $region49: #{tpu_custom_call.1} parent=47 // pred_check
          %p402 = pneg %p401
        $region50: #{tpu_custom_call.1} parent=47 // pred_check_branch
          %404 = sbr.rel (%p402) target = $region52
        $region51: #{tpu_custom_call.1} parent=47 // pred_region
          %v405 = vld [vmem:[%s371] sm:$0xff]
          %vm406 = vcmask 261120
          %407 = vst.msk [vmem:[%s367] sm:$0xff] %vm406, %v405
        $region52: #{tpu_custom_call.1} parent=47 // pred_fallthru
          _
        %v408 = vld [vmem:[%s367] sm:$0xff]
        %v409 = vld [vmem:[%s399] sm:$0xff]
        %v410 = vld [vmem:[%s399 + $0x8] sm:$0x1]
        %v411 = vld [vmem:[%s376] sm:$0xf]
        %v412 = vld [vmem:[%s376 + $0x4] sm:$0xf]
        %v413 = vld [vmem:[%s376 + $0x8] sm:$0xf]
        %v414 = vld [vmem:[%s376 + $0xc] sm:$0xf]
        %v415 = vld [vmem:[%s381] sm:$0xf]
        %v416 = vld [vmem:[%s381 + $0x4] sm:$0xf]
        %v417 = vld [vmem:[%s381 + $0x8] sm:$0xf]
        %v418 = vld [vmem:[%s381 + $0xc] sm:$0xf]
        %vm419 = vcmask 261120
        %v420 = vsel %vm419, %v408, 0.0
        %421 = vadd.xlane.f32.xlu0 %v420
        %v422 = vpop.xlane.xlu0 %421
        %v423 = vrcp.pop 32.0
        %v424 = vmul.f32 %v422, %v423
        %v425 = vsub.f32 %v408, %v424
        %v426 = vmul.f32 %v425, %v425
        %v427 = vsel %vm419, %v426, 0.0
        %428 = vadd.xlane.f32.xlu0 %v427
        %v429 = vpop.xlane.xlu0 %428
        %v430 = vmul.f32 %v429, %v423
        %v431 = vadd.f32 %v430, 1e-06
        %v432 = vrsqrt.pop %v431
        %v433 = vmul.f32 %v425, %v432
        %v434 = vlaneseq
        %v435 = vshrl.u32 %v434, 7
        %v436 = vsub.s32 4, %v435
        %v437 = vrot.slane %v409, %v436
        %v438 = vmul.f32 %v433, %v437
        %v439 = vlaneseq
        %v440 = vshrl.u32 %v439, 7
        %v441 = vsub.s32 5, %v440
        %v442 = vrot.slane %v409, %v441
        %v443 = vadd.f32 %v438, %v442
        %v444 = vpack.c.bf16 %v443, %v443
        %v449 = vunpack.c.l.b16 %v411
        %v450 = vunpack.c.l.b16 %v412
        %v451 = vunpack.c.l.b16 %v413
        %v452 = vunpack.c.l.b16 %v414
        %v453 = vpack.c.b16 %v450, %v449
        %v454 = vpack.c.b16 %v452, %v451
        %v458 = vsel %vm419, %v444, 0
        %460 = vmatprep.subr.bf16.mxu0 0
        %461 = vmatpush1.bf16.msra.mxu0 %v453
        %462 = vmatprep.subr.bf16.mxu0 0
        %463 = vmatpush1.bf16.msra.mxu0 %v454
        %464 = vmatprep.subr.bf16.mxu0 0
        %465 = vmatpush1.bf16.msra.mxu0 0
        %466 = vmatprep.subr.bf16.mxu0 0
        %467 = vmatpush1.bf16.msra.mxu0 0
        %468 = vmatprep.subr.bf16.mxu0 0
        %469 = vmatpush1.bf16.msra.mxu0 0
        %470 = vmatprep.subr.bf16.mxu0 0
        %471 = vmatpush1.bf16.msra.mxu0 0
        %472 = vmatprep.subr.bf16.mxu0 0
        %473 = vmatpush1.bf16.msra.mxu0 0
        %474 = vmatprep.subr.bf16.mxu0 0
        %475 = vmatpush1.bf16.msra.mxu0 0
        %476 = vmatprep.subr.bf16.mxu0 0
        %477 = vmatpush1.bf16.msra.mxu0 0
        %478 = vmatprep.subr.bf16.mxu0 0
        %479 = vmatpush1.bf16.msra.mxu0 0
        %480 = vmatprep.subr.bf16.mxu0 0
        %481 = vmatpush1.bf16.msra.mxu0 0
        %482 = vmatprep.subr.bf16.mxu0 0
        %483 = vmatpush1.bf16.msra.mxu0 0
        %484 = vmatprep.subr.bf16.mxu0 0
        %485 = vmatpush1.bf16.msra.mxu0 0
        %486 = vmatprep.subr.bf16.mxu0 0
        %487 = vmatpush1.bf16.msra.mxu0 0
        %488 = vmatprep.subr.bf16.mxu0 0
        %489 = vmatpush1.bf16.msra.mxu0 0
        %490 = vmatprep.subr.bf16.mxu0 0
        %491 = vmatpush1.bf16.msra.mxu0 0
        %492 = vmatprep.mubr.bf16.mxu0 0
        %493 = vmatmul.mubr.bf16.gmra.mrb[0].mxu0 %v458
        %v494 = vpop.f32.mrb[0].mxu0
        %v495 = vadd.f32 0.0, %v494
        %v496 = vpop.f32.mrb[0].mxu0
        %v497 = vpop.f32.mrb[0].mxu0
        %v498 = vpop.f32.mrb[0].mxu0
        %499 = vdwg.mxu0
        %v500 = vlaneseq
        %v501 = vshrl.u32 %v500, 7
        %v502 = vsub.s32 0, %v501
        %v503 = vrot.slane %v409, %v502
        %v504 = vadd.f32 %v495, %v503
        %v505 = vpack.c.bf16 %v504, %v504
        %v506 = vlaneseq
        %v507 = vshrl.u32 %v506, 7
        %v508 = vsub.s32 1, %v507
        %v509 = vrot.slane %v409, %v508
        %511 = vrot.lane.b32.xlu0 %v509, 32
        %v512 = vpop.permute.xlu0 %511
        %v514 = vadd.f32 %v495, %v512
        %v515 = vpack.c.bf16 %v514, %v514
        %v516 = vlaneseq
        %v517 = vshrl.u32 %v516, 7
        %v518 = vsub.s32 2, %v517
        %v519 = vrot.slane %v409, %v518
        %521 = vrot.lane.b32.xlu0 %v519, 64
        %v522 = vpop.permute.xlu0 %521
        %v524 = vadd.f32 %v495, %v522
        %v525 = vpack.c.bf16 %v524, %v524
        %527 = vrot.lane.b32.xlu0 %v515, 96
        %v528 = vpop.permute.xlu0 %527
        %vm529 = vcmask 64512
        %v531 = vsel %vm529, %v505, 0
        %v534 = vsel %vm529, %v528, 0
        %536 = vmatprep.subr.bf16.mxu0 0
        %537 = vmatpush1.bf16.xpose.msra.mxu0 %v534
        %538 = vmatprep.subr.bf16.mxu0 0
        %539 = vmatpush1.bf16.xpose.msra.mxu0 0
        %540 = vmatprep.subr.bf16.mxu0 0
        %541 = vmatpush1.bf16.xpose.msra.mxu0 0
        %542 = vmatprep.subr.bf16.mxu0 0
        %543 = vmatpush1.bf16.xpose.msra.mxu0 0
        %544 = vmatprep.subr.bf16.mxu0 0
        %545 = vmatpush1.bf16.xpose.msra.mxu0 0
        %546 = vmatprep.subr.bf16.mxu0 0
        %547 = vmatpush1.bf16.xpose.msra.mxu0 0
        %548 = vmatprep.subr.bf16.mxu0 0
        %549 = vmatpush1.bf16.xpose.msra.mxu0 0
        %550 = vmatprep.subr.bf16.mxu0 0
        %551 = vmatpush1.bf16.xpose.msra.mxu0 0
        %552 = vmatprep.subr.bf16.mxu0 0
        %553 = vmatpush1.bf16.xpose.msra.mxu0 0
        %554 = vmatprep.subr.bf16.mxu0 0
        %555 = vmatpush1.bf16.xpose.msra.mxu0 0
        %556 = vmatprep.subr.bf16.mxu0 0
        %557 = vmatpush1.bf16.xpose.msra.mxu0 0
        %558 = vmatprep.subr.bf16.mxu0 0
        %559 = vmatpush1.bf16.xpose.msra.mxu0 0
        %560 = vmatprep.subr.bf16.mxu0 0
        %561 = vmatpush1.bf16.xpose.msra.mxu0 0
        %562 = vmatprep.subr.bf16.mxu0 0
        %563 = vmatpush1.bf16.xpose.msra.mxu0 0
        %564 = vmatprep.subr.bf16.mxu0 0
        %565 = vmatpush1.bf16.xpose.msra.mxu0 0
        %566 = vmatprep.subr.bf16.mxu0 0
        %567 = vmatpush1.bf16.xpose.msra.mxu0 0
        %568 = vmatprep.mubr.bf16.mxu0 0
        %569 = vmatmul.mubr.bf16.gmra.mrb[0].mxu0 %v531
        %v570 = vpop.f32.mrb[0].mxu0
        %v571 = vadd.f32 0.0, %v570
        %v572 = vpop.f32.mrb[0].mxu0
        %v573 = vpop.f32.mrb[0].mxu0
        %v574 = vpop.f32.mrb[0].mxu0
        %575 = vdwg.mxu0
        %v576 = vsel %vm529, %v571, -inf
        %577 = vmax.xlane.f32.xlu0 %v576
        %v578 = vpop.xlane.xlu0 %577
        %v579 = vsub.f32 %v571, %v578
        %v580 = vmul.f32 %v579, 1.442695
        %v581 = vpow.pop %v580
        %v582 = vsel %vm529, %v581, 0.0
        %583 = vadd.xlane.f32.xlu0 %v582
        %v584 = vpop.xlane.xlu0 %583
        %v585 = vrcp.pop %v584
        %v586 = vmul.f32 %v581, %v585
        %v587 = vpack.c.bf16 %v586, %v586
        %589 = vrot.lane.b32.xlu0 %v525, 64
        %v590 = vpop.permute.xlu0 %589
        %v592 = vsel %vm529, %v587, 0
        %vm594 = vcmask 1043456
        %v596 = vsel %vm594, %v590, 0
        %598 = vmatprep.subr.bf16.mxu0 0
        %599 = vmatpush1.bf16.msra.mxu0 %v596
        %600 = vmatprep.subr.bf16.mxu0 0
        %601 = vmatpush1.bf16.msra.mxu0 0
        %602 = vmatprep.subr.bf16.mxu0 0
        %603 = vmatpush1.bf16.msra.mxu0 0
        %604 = vmatprep.subr.bf16.mxu0 0
        %605 = vmatpush1.bf16.msra.mxu0 0
        %606 = vmatprep.subr.bf16.mxu0 0
        %607 = vmatpush1.bf16.msra.mxu0 0
        %608 = vmatprep.subr.bf16.mxu0 0
        %609 = vmatpush1.bf16.msra.mxu0 0
        %610 = vmatprep.subr.bf16.mxu0 0
        %611 = vmatpush1.bf16.msra.mxu0 0
        %612 = vmatprep.subr.bf16.mxu0 0
        %613 = vmatpush1.bf16.msra.mxu0 0
        %614 = vmatprep.subr.bf16.mxu0 0
        %615 = vmatpush1.bf16.msra.mxu0 0
        %616 = vmatprep.subr.bf16.mxu0 0
        %617 = vmatpush1.bf16.msra.mxu0 0
        %618 = vmatprep.subr.bf16.mxu0 0
        %619 = vmatpush1.bf16.msra.mxu0 0
        %620 = vmatprep.subr.bf16.mxu0 0
        %621 = vmatpush1.bf16.msra.mxu0 0
        %622 = vmatprep.subr.bf16.mxu0 0
        %623 = vmatpush1.bf16.msra.mxu0 0
        %624 = vmatprep.subr.bf16.mxu0 0
        %625 = vmatpush1.bf16.msra.mxu0 0
        %626 = vmatprep.subr.bf16.mxu0 0
        %627 = vmatpush1.bf16.msra.mxu0 0
        %628 = vmatprep.subr.bf16.mxu0 0
        %629 = vmatpush1.bf16.msra.mxu0 0
        %630 = vmatprep.mubr.bf16.mxu0 0
        %631 = vmatmul.mubr.bf16.gmra.mrb[0].mxu0 %v592
        %v632 = vpop.f32.mrb[0].mxu0
        %v633 = vadd.f32 0.0, %v632
        %v634 = vpop.f32.mrb[0].mxu0
        %v635 = vpop.f32.mrb[0].mxu0
        %v636 = vpop.f32.mrb[0].mxu0
        %637 = vdwg.mxu0
        %v638 = vpack.c.bf16 %v633, %v633
        %640 = vrot.lane.b32.xlu0 %v505, 120
        %v641 = vpop.permute.xlu0 %640
        %642 = vrot.lane.b32.xlu0 %v515, 88
        %v643 = vpop.permute.xlu0 %642
        %v645 = vsel %vm529, %v641, 0
        %v648 = vsel %vm529, %v643, 0
        %650 = vmatprep.subr.bf16.mxu0 0
        %651 = vmatpush1.bf16.xpose.msra.mxu0 %v648
        %652 = vmatprep.subr.bf16.mxu0 0
        %653 = vmatpush1.bf16.xpose.msra.mxu0 0
        %654 = vmatprep.subr.bf16.mxu0 0
        %655 = vmatpush1.bf16.xpose.msra.mxu0 0
        %656 = vmatprep.subr.bf16.mxu0 0
        %657 = vmatpush1.bf16.xpose.msra.mxu0 0
        %658 = vmatprep.subr.bf16.mxu0 0
        %659 = vmatpush1.bf16.xpose.msra.mxu0 0
        %660 = vmatprep.subr.bf16.mxu0 0
        %661 = vmatpush1.bf16.xpose.msra.mxu0 0
        %662 = vmatprep.subr.bf16.mxu0 0
        %663 = vmatpush1.bf16.xpose.msra.mxu0 0
        %664 = vmatprep.subr.bf16.mxu0 0
        %665 = vmatpush1.bf16.xpose.msra.mxu0 0
        %666 = vmatprep.subr.bf16.mxu0 0
        %667 = vmatpush1.bf16.xpose.msra.mxu0 0
        %668 = vmatprep.subr.bf16.mxu0 0
        %669 = vmatpush1.bf16.xpose.msra.mxu0 0
        %670 = vmatprep.subr.bf16.mxu0 0
        %671 = vmatpush1.bf16.xpose.msra.mxu0 0
        %672 = vmatprep.subr.bf16.mxu0 0
        %673 = vmatpush1.bf16.xpose.msra.mxu0 0
        %674 = vmatprep.subr.bf16.mxu0 0
        %675 = vmatpush1.bf16.xpose.msra.mxu0 0
        %676 = vmatprep.subr.bf16.mxu0 0
        %677 = vmatpush1.bf16.xpose.msra.mxu0 0
        %678 = vmatprep.subr.bf16.mxu0 0
        %679 = vmatpush1.bf16.xpose.msra.mxu0 0
        %680 = vmatprep.subr.bf16.mxu0 0
        %681 = vmatpush1.bf16.xpose.msra.mxu0 0
        %682 = vmatprep.mubr.bf16.mxu0 0
        %683 = vmatmul.mubr.bf16.gmra.mrb[0].mxu0 %v645
        %v684 = vpop.f32.mrb[0].mxu0
        %v685 = vadd.f32 0.0, %v684
        %v686 = vpop.f32.mrb[0].mxu0
        %v687 = vpop.f32.mrb[0].mxu0
        %v688 = vpop.f32.mrb[0].mxu0
        %689 = vdwg.mxu0
        %v690 = vsel %vm529, %v685, -inf
        %691 = vmax.xlane.f32.xlu0 %v690
        %v692 = vpop.xlane.xlu0 %691
        %v693 = vsub.f32 %v685, %v692
        %v694 = vmul.f32 %v693, 1.442695
        %v695 = vpow.pop %v694
        %v696 = vsel %vm529, %v695, 0.0
        %697 = vadd.xlane.f32.xlu0 %v696
        %v698 = vpop.xlane.xlu0 %697
        %v699 = vrcp.pop %v698
        %v700 = vmul.f32 %v695, %v699
        %v701 = vpack.c.bf16 %v700, %v700
        %702 = vrot.lane.b32.xlu0 %v525, 56
        %v703 = vpop.permute.xlu0 %702
        %v705 = vsel %vm529, %v701, 0
        %v708 = vsel %vm594, %v703, 0
        %710 = vmatprep.subr.bf16.mxu0 0
        %711 = vmatpush1.bf16.msra.mxu0 %v708
        %712 = vmatprep.subr.bf16.mxu0 0
        %713 = vmatpush1.bf16.msra.mxu0 0
        %714 = vmatprep.subr.bf16.mxu0 0
        %715 = vmatpush1.bf16.msra.mxu0 0
        %716 = vmatprep.subr.bf16.mxu0 0
        %717 = vmatpush1.bf16.msra.mxu0 0
        %718 = vmatprep.subr.bf16.mxu0 0
        %719 = vmatpush1.bf16.msra.mxu0 0
        %720 = vmatprep.subr.bf16.mxu0 0
        %721 = vmatpush1.bf16.msra.mxu0 0
        %722 = vmatprep.subr.bf16.mxu0 0
        %723 = vmatpush1.bf16.msra.mxu0 0
        %724 = vmatprep.subr.bf16.mxu0 0
        %725 = vmatpush1.bf16.msra.mxu0 0
        %726 = vmatprep.subr.bf16.mxu0 0
        %727 = vmatpush1.bf16.msra.mxu0 0
        %728 = vmatprep.subr.bf16.mxu0 0
        %729 = vmatpush1.bf16.msra.mxu0 0
        %730 = vmatprep.subr.bf16.mxu0 0
        %731 = vmatpush1.bf16.msra.mxu0 0
        %732 = vmatprep.subr.bf16.mxu0 0
        %733 = vmatpush1.bf16.msra.mxu0 0
        %734 = vmatprep.subr.bf16.mxu0 0
        %735 = vmatpush1.bf16.msra.mxu0 0
        %736 = vmatprep.subr.bf16.mxu0 0
        %737 = vmatpush1.bf16.msra.mxu0 0
        %738 = vmatprep.subr.bf16.mxu0 0
        %739 = vmatpush1.bf16.msra.mxu0 0
        %740 = vmatprep.subr.bf16.mxu0 0
        %741 = vmatpush1.bf16.msra.mxu0 0
        %742 = vmatprep.mubr.bf16.mxu0 0
        %743 = vmatmul.mubr.bf16.gmra.mrb[0].mxu0 %v705
        %v744 = vpop.f32.mrb[0].mxu0
        %v745 = vadd.f32 0.0, %v744
        %v746 = vpop.f32.mrb[0].mxu0
        %v747 = vpop.f32.mrb[0].mxu0
        %v748 = vpop.f32.mrb[0].mxu0
        %749 = vdwg.mxu0
        %v750 = vpack.c.bf16 %v745, %v745
        %v752 = vsel %vm529, %v750, 0
        %v755 = vsel %vm594, %v416, 0
        %757 = vmatprep.subr.bf16.mxu0 0
        %758 = vmatpush1.bf16.msra.mxu0 %v755
        %759 = vmatprep.subr.bf16.mxu0 0
        %760 = vmatpush1.bf16.msra.mxu0 0
        %761 = vmatprep.subr.bf16.mxu0 0
        %762 = vmatpush1.bf16.msra.mxu0 0
        %763 = vmatprep.subr.bf16.mxu0 0
        %764 = vmatpush1.bf16.msra.mxu0 0
        %765 = vmatprep.subr.bf16.mxu0 0
        %766 = vmatpush1.bf16.msra.mxu0 0
        %767 = vmatprep.subr.bf16.mxu0 0
        %768 = vmatpush1.bf16.msra.mxu0 0
        %769 = vmatprep.subr.bf16.mxu0 0
        %770 = vmatpush1.bf16.msra.mxu0 0
        %771 = vmatprep.subr.bf16.mxu0 0
        %772 = vmatpush1.bf16.msra.mxu0 0
        %773 = vmatprep.subr.bf16.mxu0 0
        %774 = vmatpush1.bf16.msra.mxu0 0
        %775 = vmatprep.subr.bf16.mxu0 0
        %776 = vmatpush1.bf16.msra.mxu0 0
        %777 = vmatprep.subr.bf16.mxu0 0
        %778 = vmatpush1.bf16.msra.mxu0 0
        %779 = vmatprep.subr.bf16.mxu0 0
        %780 = vmatpush1.bf16.msra.mxu0 0
        %781 = vmatprep.subr.bf16.mxu0 0
        %782 = vmatpush1.bf16.msra.mxu0 0
        %783 = vmatprep.subr.bf16.mxu0 0
        %784 = vmatpush1.bf16.msra.mxu0 0
        %785 = vmatprep.subr.bf16.mxu0 0
        %786 = vmatpush1.bf16.msra.mxu0 0
        %787 = vmatprep.subr.bf16.mxu0 0
        %788 = vmatpush1.bf16.msra.mxu0 0
        %789 = vmatprep.mubr.bf16.mxu0 0
        %790 = vmatmul.mubr.bf16.gmra.mrb[0].mxu0 %v752
        %v791 = vpop.f32.mrb[0].mxu0
        %v792 = vadd.f32 0.0, %v791
        %v793 = vpop.f32.mrb[0].mxu0
        %v794 = vpop.f32.mrb[0].mxu0
        %v795 = vpop.f32.mrb[0].mxu0
        %796 = vdwg.mxu0
        %v798 = vsel %vm529, %v638, 0
        %v801 = vsel %vm594, %v415, 0
        %803 = vmatprep.subr.bf16.mxu0 0
        %804 = vmatpush1.bf16.msra.mxu0 %v801
        %805 = vmatprep.subr.bf16.mxu0 0
        %806 = vmatpush1.bf16.msra.mxu0 0
        %807 = vmatprep.subr.bf16.mxu0 0
        %808 = vmatpush1.bf16.msra.mxu0 0
        %809 = vmatprep.subr.bf16.mxu0 0
        %810 = vmatpush1.bf16.msra.mxu0 0
        %811 = vmatprep.subr.bf16.mxu0 0
        %812 = vmatpush1.bf16.msra.mxu0 0
        %813 = vmatprep.subr.bf16.mxu0 0
        %814 = vmatpush1.bf16.msra.mxu0 0
        %815 = vmatprep.subr.bf16.mxu0 0
        %816 = vmatpush1.bf16.msra.mxu0 0
        %817 = vmatprep.subr.bf16.mxu0 0
        %818 = vmatpush1.bf16.msra.mxu0 0
        %819 = vmatprep.subr.bf16.mxu0 0
        %820 = vmatpush1.bf16.msra.mxu0 0
        %821 = vmatprep.subr.bf16.mxu0 0
        %822 = vmatpush1.bf16.msra.mxu0 0
        %823 = vmatprep.subr.bf16.mxu0 0
        %824 = vmatpush1.bf16.msra.mxu0 0
        %825 = vmatprep.subr.bf16.mxu0 0
        %826 = vmatpush1.bf16.msra.mxu0 0
        %827 = vmatprep.subr.bf16.mxu0 0
        %828 = vmatpush1.bf16.msra.mxu0 0
        %829 = vmatprep.subr.bf16.mxu0 0
        %830 = vmatpush1.bf16.msra.mxu0 0
        %831 = vmatprep.subr.bf16.mxu0 0
        %832 = vmatpush1.bf16.msra.mxu0 0
        %833 = vmatprep.subr.bf16.mxu0 0
        %834 = vmatpush1.bf16.msra.mxu0 0
        %835 = vmatprep.mubr.bf16.mxu0 0
        %836 = vmatmul.mubr.bf16.gmra.mrb[0].mxu0 %v798
        %v837 = vpop.f32.mrb[0].mxu0
        %v838 = vadd.f32 %v792, %v837
        %v839 = vpop.f32.mrb[0].mxu0
        %v840 = vpop.f32.mrb[0].mxu0
        %v841 = vpop.f32.mrb[0].mxu0
        %842 = vdwg.mxu0
        %843 = vrot.lane.b32.xlu0 %v505, 112
        %v844 = vpop.permute.xlu0 %843
        %845 = vrot.lane.b32.xlu0 %v515, 80
        %v846 = vpop.permute.xlu0 %845
        %v848 = vsel %vm529, %v844, 0
        %v851 = vsel %vm529, %v846, 0
        %853 = vmatprep.subr.bf16.mxu0 0
        %854 = vmatpush1.bf16.xpose.msra.mxu0 %v851
        %855 = vmatprep.subr.bf16.mxu0 0
        %856 = vmatpush1.bf16.xpose.msra.mxu0 0
        %857 = vmatprep.subr.bf16.mxu0 0
        %858 = vmatpush1.bf16.xpose.msra.mxu0 0
        %859 = vmatprep.subr.bf16.mxu0 0
        %860 = vmatpush1.bf16.xpose.msra.mxu0 0
        %861 = vmatprep.subr.bf16.mxu0 0
        %862 = vmatpush1.bf16.xpose.msra.mxu0 0
        %863 = vmatprep.subr.bf16.mxu0 0
        %864 = vmatpush1.bf16.xpose.msra.mxu0 0
        %865 = vmatprep.subr.bf16.mxu0 0
        %866 = vmatpush1.bf16.xpose.msra.mxu0 0
        %867 = vmatprep.subr.bf16.mxu0 0
        %868 = vmatpush1.bf16.xpose.msra.mxu0 0
        %869 = vmatprep.subr.bf16.mxu0 0
        %870 = vmatpush1.bf16.xpose.msra.mxu0 0
        %871 = vmatprep.subr.bf16.mxu0 0
        %872 = vmatpush1.bf16.xpose.msra.mxu0 0
        %873 = vmatprep.subr.bf16.mxu0 0
        %874 = vmatpush1.bf16.xpose.msra.mxu0 0
        %875 = vmatprep.subr.bf16.mxu0 0
        %876 = vmatpush1.bf16.xpose.msra.mxu0 0
        %877 = vmatprep.subr.bf16.mxu0 0
        %878 = vmatpush1.bf16.xpose.msra.mxu0 0
        %879 = vmatprep.subr.bf16.mxu0 0
        %880 = vmatpush1.bf16.xpose.msra.mxu0 0
        %881 = vmatprep.subr.bf16.mxu0 0
        %882 = vmatpush1.bf16.xpose.msra.mxu0 0
        %883 = vmatprep.subr.bf16.mxu0 0
        %884 = vmatpush1.bf16.xpose.msra.mxu0 0
        %885 = vmatprep.mubr.bf16.mxu0 0
        %886 = vmatmul.mubr.bf16.gmra.mrb[0].mxu0 %v848
        %v887 = vpop.f32.mrb[0].mxu0
        %v888 = vadd.f32 0.0, %v887
        %v889 = vpop.f32.mrb[0].mxu0
        %v890 = vpop.f32.mrb[0].mxu0
        %v891 = vpop.f32.mrb[0].mxu0
        %892 = vdwg.mxu0
        %v893 = vsel %vm529, %v888, -inf
        %894 = vmax.xlane.f32.xlu0 %v893
        %v895 = vpop.xlane.xlu0 %894
        %v896 = vsub.f32 %v888, %v895
        %v897 = vmul.f32 %v896, 1.442695
        %v898 = vpow.pop %v897
        %v899 = vsel %vm529, %v898, 0.0
        %900 = vadd.xlane.f32.xlu0 %v899
        %v901 = vpop.xlane.xlu0 %900
        %v902 = vrcp.pop %v901
        %v903 = vmul.f32 %v898, %v902
        %v904 = vpack.c.bf16 %v903, %v903
        %905 = vrot.lane.b32.xlu0 %v525, 48
        %v906 = vpop.permute.xlu0 %905
        %v908 = vsel %vm529, %v904, 0
        %v911 = vsel %vm594, %v906, 0
        %913 = vmatprep.subr.bf16.mxu0 0
        %914 = vmatpush1.bf16.msra.mxu0 %v911
        %915 = vmatprep.subr.bf16.mxu0 0
        %916 = vmatpush1.bf16.msra.mxu0 0
        %917 = vmatprep.subr.bf16.mxu0 0
        %918 = vmatpush1.bf16.msra.mxu0 0
        %919 = vmatprep.subr.bf16.mxu0 0
        %920 = vmatpush1.bf16.msra.mxu0 0
        %921 = vmatprep.subr.bf16.mxu0 0
        %922 = vmatpush1.bf16.msra.mxu0 0
        %923 = vmatprep.subr.bf16.mxu0 0
        %924 = vmatpush1.bf16.msra.mxu0 0
        %925 = vmatprep.subr.bf16.mxu0 0
        %926 = vmatpush1.bf16.msra.mxu0 0
        %927 = vmatprep.subr.bf16.mxu0 0
        %928 = vmatpush1.bf16.msra.mxu0 0
        %929 = vmatprep.subr.bf16.mxu0 0
        %930 = vmatpush1.bf16.msra.mxu0 0
        %931 = vmatprep.subr.bf16.mxu0 0
        %932 = vmatpush1.bf16.msra.mxu0 0
        %933 = vmatprep.subr.bf16.mxu0 0
        %934 = vmatpush1.bf16.msra.mxu0 0
        %935 = vmatprep.subr.bf16.mxu0 0
        %936 = vmatpush1.bf16.msra.mxu0 0
        %937 = vmatprep.subr.bf16.mxu0 0
        %938 = vmatpush1.bf16.msra.mxu0 0
        %939 = vmatprep.subr.bf16.mxu0 0
        %940 = vmatpush1.bf16.msra.mxu0 0
        %941 = vmatprep.subr.bf16.mxu0 0
        %942 = vmatpush1.bf16.msra.mxu0 0
        %943 = vmatprep.subr.bf16.mxu0 0
        %944 = vmatpush1.bf16.msra.mxu0 0
        %945 = vmatprep.mubr.bf16.mxu0 0
        %946 = vmatmul.mubr.bf16.gmra.mrb[0].mxu0 %v908
        %v947 = vpop.f32.mrb[0].mxu0
        %v948 = vadd.f32 0.0, %v947
        %v949 = vpop.f32.mrb[0].mxu0
        %v950 = vpop.f32.mrb[0].mxu0
        %v951 = vpop.f32.mrb[0].mxu0
        %952 = vdwg.mxu0
        %v953 = vpack.c.bf16 %v948, %v948
        %v955 = vsel %vm529, %v953, 0
        %v958 = vsel %vm594, %v417, 0
        %960 = vmatprep.subr.bf16.mxu0 0
        %961 = vmatpush1.bf16.msra.mxu0 %v958
        %962 = vmatprep.subr.bf16.mxu0 0
        %963 = vmatpush1.bf16.msra.mxu0 0
        %964 = vmatprep.subr.bf16.mxu0 0
        %965 = vmatpush1.bf16.msra.mxu0 0
        %966 = vmatprep.subr.bf16.mxu0 0
        %967 = vmatpush1.bf16.msra.mxu0 0
        %968 = vmatprep.subr.bf16.mxu0 0
        %969 = vmatpush1.bf16.msra.mxu0 0
        %970 = vmatprep.subr.bf16.mxu0 0
        %971 = vmatpush1.bf16.msra.mxu0 0
        %972 = vmatprep.subr.bf16.mxu0 0
        %973 = vmatpush1.bf16.msra.mxu0 0
        %974 = vmatprep.subr.bf16.mxu0 0
        %975 = vmatpush1.bf16.msra.mxu0 0
        %976 = vmatprep.subr.bf16.mxu0 0
        %977 = vmatpush1.bf16.msra.mxu0 0
        %978 = vmatprep.subr.bf16.mxu0 0
        %979 = vmatpush1.bf16.msra.mxu0 0
        %980 = vmatprep.subr.bf16.mxu0 0
        %981 = vmatpush1.bf16.msra.mxu0 0
        %982 = vmatprep.subr.bf16.mxu0 0
        %983 = vmatpush1.bf16.msra.mxu0 0
        %984 = vmatprep.subr.bf16.mxu0 0
        %985 = vmatpush1.bf16.msra.mxu0 0
        %986 = vmatprep.subr.bf16.mxu0 0
        %987 = vmatpush1.bf16.msra.mxu0 0
        %988 = vmatprep.subr.bf16.mxu0 0
        %989 = vmatpush1.bf16.msra.mxu0 0
        %990 = vmatprep.subr.bf16.mxu0 0
        %991 = vmatpush1.bf16.msra.mxu0 0
        %992 = vmatprep.mubr.bf16.mxu0 0
        %993 = vmatmul.mubr.bf16.gmra.mrb[0].mxu0 %v955
        %v994 = vpop.f32.mrb[0].mxu0
        %v995 = vadd.f32 0.0, %v994
        %v996 = vpop.f32.mrb[0].mxu0
        %v997 = vpop.f32.mrb[0].mxu0
        %v998 = vpop.f32.mrb[0].mxu0
        %999 = vdwg.mxu0
        %v1000 = vadd.f32 %v838, %v995
        %1001 = vrot.lane.b32.xlu0 %v505, 104
        %v1002 = vpop.permute.xlu0 %1001
        %1003 = vrot.lane.b32.xlu0 %v515, 72
        %v1004 = vpop.permute.xlu0 %1003
        %v1006 = vsel %vm529, %v1002, 0
        %v1009 = vsel %vm529, %v1004, 0
        %1011 = vmatprep.subr.bf16.mxu0 0
        %1012 = vmatpush1.bf16.xpose.msra.mxu0 %v1009
        %1013 = vmatprep.subr.bf16.mxu0 0
        %1014 = vmatpush1.bf16.xpose.msra.mxu0 0
        %1015 = vmatprep.subr.bf16.mxu0 0
        %1016 = vmatpush1.bf16.xpose.msra.mxu0 0
        %1017 = vmatprep.subr.bf16.mxu0 0
        %1018 = vmatpush1.bf16.xpose.msra.mxu0 0
        %1019 = vmatprep.subr.bf16.mxu0 0
        %1020 = vmatpush1.bf16.xpose.msra.mxu0 0
        %1021 = vmatprep.subr.bf16.mxu0 0
        %1022 = vmatpush1.bf16.xpose.msra.mxu0 0
        %1023 = vmatprep.subr.bf16.mxu0 0
        %1024 = vmatpush1.bf16.xpose.msra.mxu0 0
        %1025 = vmatprep.subr.bf16.mxu0 0
        %1026 = vmatpush1.bf16.xpose.msra.mxu0 0
        %1027 = vmatprep.subr.bf16.mxu0 0
        %1028 = vmatpush1.bf16.xpose.msra.mxu0 0
        %1029 = vmatprep.subr.bf16.mxu0 0
        %1030 = vmatpush1.bf16.xpose.msra.mxu0 0
        %1031 = vmatprep.subr.bf16.mxu0 0
        %1032 = vmatpush1.bf16.xpose.msra.mxu0 0
        %1033 = vmatprep.subr.bf16.mxu0 0
        %1034 = vmatpush1.bf16.xpose.msra.mxu0 0
        %1035 = vmatprep.subr.bf16.mxu0 0
        %1036 = vmatpush1.bf16.xpose.msra.mxu0 0
        %1037 = vmatprep.subr.bf16.mxu0 0
        %1038 = vmatpush1.bf16.xpose.msra.mxu0 0
        %1039 = vmatprep.subr.bf16.mxu0 0
        %1040 = vmatpush1.bf16.xpose.msra.mxu0 0
        %1041 = vmatprep.subr.bf16.mxu0 0
        %1042 = vmatpush1.bf16.xpose.msra.mxu0 0
        %1043 = vmatprep.mubr.bf16.mxu0 0
        %1044 = vmatmul.mubr.bf16.gmra.mrb[0].mxu0 %v1006
        %v1045 = vpop.f32.mrb[0].mxu0
        %v1046 = vadd.f32 0.0, %v1045
        %v1047 = vpop.f32.mrb[0].mxu0
        %v1048 = vpop.f32.mrb[0].mxu0
        %v1049 = vpop.f32.mrb[0].mxu0
        %1050 = vdwg.mxu0
        %v1051 = vsel %vm529, %v1046, -inf
        %1052 = vmax.xlane.f32.xlu0 %v1051
        %v1053 = vpop.xlane.xlu0 %1052
        %v1054 = vsub.f32 %v1046, %v1053
        %v1055 = vmul.f32 %v1054, 1.442695
        %v1056 = vpow.pop %v1055
        %v1057 = vsel %vm529, %v1056, 0.0
        %1058 = vadd.xlane.f32.xlu0 %v1057
        %v1059 = vpop.xlane.xlu0 %1058
        %v1060 = vrcp.pop %v1059
        %v1061 = vmul.f32 %v1056, %v1060
        %v1062 = vpack.c.bf16 %v1061, %v1061
        %1063 = vrot.lane.b32.xlu0 %v525, 40
        %v1064 = vpop.permute.xlu0 %1063
        %v1066 = vsel %vm529, %v1062, 0
        %v1069 = vsel %vm594, %v1064, 0
        %1071 = vmatprep.subr.bf16.mxu0 0
        %1072 = vmatpush1.bf16.msra.mxu0 %v1069
        %1073 = vmatprep.subr.bf16.mxu0 0
        %1074 = vmatpush1.bf16.msra.mxu0 0
        %1075 = vmatprep.subr.bf16.mxu0 0
        %1076 = vmatpush1.bf16.msra.mxu0 0
        %1077 = vmatprep.subr.bf16.mxu0 0
        %1078 = vmatpush1.bf16.msra.mxu0 0
        %1079 = vmatprep.subr.bf16.mxu0 0
        %1080 = vmatpush1.bf16.msra.mxu0 0
        %1081 = vmatprep.subr.bf16.mxu0 0
        %1082 = vmatpush1.bf16.msra.mxu0 0
        %1083 = vmatprep.subr.bf16.mxu0 0
        %1084 = vmatpush1.bf16.msra.mxu0 0
        %1085 = vmatprep.subr.bf16.mxu0 0
        %1086 = vmatpush1.bf16.msra.mxu0 0
        %1087 = vmatprep.subr.bf16.mxu0 0
        %1088 = vmatpush1.bf16.msra.mxu0 0
        %1089 = vmatprep.subr.bf16.mxu0 0
        %1090 = vmatpush1.bf16.msra.mxu0 0
        %1091 = vmatprep.subr.bf16.mxu0 0
        %1092 = vmatpush1.bf16.msra.mxu0 0
        %1093 = vmatprep.subr.bf16.mxu0 0
        %1094 = vmatpush1.bf16.msra.mxu0 0
        %1095 = vmatprep.subr.bf16.mxu0 0
        %1096 = vmatpush1.bf16.msra.mxu0 0
        %1097 = vmatprep.subr.bf16.mxu0 0
        %1098 = vmatpush1.bf16.msra.mxu0 0
        %1099 = vmatprep.subr.bf16.mxu0 0
        %1100 = vmatpush1.bf16.msra.mxu0 0
        %1101 = vmatprep.subr.bf16.mxu0 0
        %1102 = vmatpush1.bf16.msra.mxu0 0
        %1103 = vmatprep.mubr.bf16.mxu0 0
        %1104 = vmatmul.mubr.bf16.gmra.mrb[0].mxu0 %v1066
        %v1105 = vpop.f32.mrb[0].mxu0
        %v1106 = vadd.f32 0.0, %v1105
        %v1107 = vpop.f32.mrb[0].mxu0
        %v1108 = vpop.f32.mrb[0].mxu0
        %v1109 = vpop.f32.mrb[0].mxu0
        %1110 = vdwg.mxu0
        %v1111 = vpack.c.bf16 %v1106, %v1106
        %v1113 = vsel %vm529, %v1111, 0
        %v1116 = vsel %vm594, %v418, 0
        %1118 = vmatprep.subr.bf16.mxu0 0
        %1119 = vmatpush1.bf16.msra.mxu0 %v1116
        %1120 = vmatprep.subr.bf16.mxu0 0
        %1121 = vmatpush1.bf16.msra.mxu0 0
        %1122 = vmatprep.subr.bf16.mxu0 0
        %1123 = vmatpush1.bf16.msra.mxu0 0
        %1124 = vmatprep.subr.bf16.mxu0 0
        %1125 = vmatpush1.bf16.msra.mxu0 0
        %1126 = vmatprep.subr.bf16.mxu0 0
        %1127 = vmatpush1.bf16.msra.mxu0 0
        %1128 = vmatprep.subr.bf16.mxu0 0
        %1129 = vmatpush1.bf16.msra.mxu0 0
        %1130 = vmatprep.subr.bf16.mxu0 0
        %1131 = vmatpush1.bf16.msra.mxu0 0
        %1132 = vmatprep.subr.bf16.mxu0 0
        %1133 = vmatpush1.bf16.msra.mxu0 0
        %1134 = vmatprep.subr.bf16.mxu0 0
        %1135 = vmatpush1.bf16.msra.mxu0 0
        %1136 = vmatprep.subr.bf16.mxu0 0
        %1137 = vmatpush1.bf16.msra.mxu0 0
        %1138 = vmatprep.subr.bf16.mxu0 0
        %1139 = vmatpush1.bf16.msra.mxu0 0
        %1140 = vmatprep.subr.bf16.mxu0 0
        %1141 = vmatpush1.bf16.msra.mxu0 0
        %1142 = vmatprep.subr.bf16.mxu0 0
        %1143 = vmatpush1.bf16.msra.mxu0 0
        %1144 = vmatprep.subr.bf16.mxu0 0
        %1145 = vmatpush1.bf16.msra.mxu0 0
        %1146 = vmatprep.subr.bf16.mxu0 0
        %1147 = vmatpush1.bf16.msra.mxu0 0
        %1148 = vmatprep.subr.bf16.mxu0 0
        %1149 = vmatpush1.bf16.msra.mxu0 0
        %1150 = vmatprep.mubr.bf16.mxu0 0
        %1151 = vmatmul.mubr.bf16.gmra.mrb[0].mxu0 %v1113
        %v1152 = vpop.f32.mrb[0].mxu0
        %v1153 = vadd.f32 0.0, %v1152
        %v1154 = vpop.f32.mrb[0].mxu0
        %v1155 = vpop.f32.mrb[0].mxu0
        %v1156 = vpop.f32.mrb[0].mxu0
        %1157 = vdwg.mxu0
        %v1158 = vadd.f32 %v1000, %v1153
        %v1159 = vlaneseq
        %v1160 = vshrl.u32 %v1159, 7
        %v1161 = vsub.s32 3, %v1160
        %v1162 = vrot.slane %v409, %v1161
        %v1163 = vadd.f32 %v1158, %v1162
        %v1164 = vadd.f32 %v1163, %v408
        %v1165 = vsel %vm419, %v1164, 0.0
        %1166 = vadd.xlane.f32.xlu0 %v1165
        %v1167 = vpop.xlane.xlu0 %1166
        %v1168 = vmul.f32 %v1167, %v423
        %v1169 = vsub.f32 %v1164, %v1168
        %v1170 = vmul.f32 %v1169, %v1169
        %v1171 = vsel %vm419, %v1170, 0.0
        %1172 = vadd.xlane.f32.xlu0 %v1171
        %v1173 = vpop.xlane.xlu0 %1172
        %v1174 = vmul.f32 %v1173, %v423
        %v1175 = vadd.f32 %v1174, 1e-06
        %v1176 = vrsqrt.pop %v1175
        %v1177 = vmul.f32 %v1169, %v1176
        %v1178 = vlaneseq
        %v1179 = vshrl.u32 %v1178, 7
        %v1180 = vsub.s32 6, %v1179
        %v1181 = vrot.slane %v409, %v1180
        %v1182 = vmul.f32 %v1177, %v1181
        %v1183 = vlaneseq
        %v1184 = vshrl.u32 %v1183, 7
        %v1185 = vsub.s32 7, %v1184
        %v1186 = vrot.slane %v409, %v1185
        %v1187 = vadd.f32 %v1182, %v1186
        %v1188 = vpack.c.bf16 %v1187, %v1187
        %v1189 = vld [vmem:[%s386] sm:$0xf]
        %v1190 = vld [vmem:[%s386 + $0x4] sm:$0xf]
        %v1191 = vld [vmem:[%s386 + $0x8] sm:$0xf]
        %v1192 = vld [vmem:[%s386 + $0xc] sm:$0xf]
        %v1193 = vld [vmem:[%s389] sm:$0x1]
        %v1195 = vlaneseq
        %v1196 = vshrl.u32 %v1195, 7
        %v1197 = vsub.s32 0, %v1196
        %v1198 = vrot.slane %v1193, %v1197
        %v1204 = vunpack.c.l.b16 %v1189
        %v1205 = vunpack.c.l.b16 %v1190
        %v1206 = vunpack.c.l.b16 %v1191
        %v1207 = vunpack.c.l.b16 %v1192
        %v1208 = vpack.c.b16 %v1205, %v1204
        %v1209 = vpack.c.b16 %v1207, %v1206
        %v1213 = vsel %vm419, %v1188, 0
        %1215 = vmatprep.subr.bf16.mxu0 0
        %1216 = vmatpush1.bf16.msra.mxu0 %v1208
        %1217 = vmatprep.subr.bf16.mxu0 0
        %1218 = vmatpush1.bf16.msra.mxu0 %v1209
        %1219 = vmatprep.subr.bf16.mxu0 0
        %1220 = vmatpush1.bf16.msra.mxu0 0
        %1221 = vmatprep.subr.bf16.mxu0 0
        %1222 = vmatpush1.bf16.msra.mxu0 0
        %1223 = vmatprep.subr.bf16.mxu0 0
        %1224 = vmatpush1.bf16.msra.mxu0 0
        %1225 = vmatprep.subr.bf16.mxu0 0
        %1226 = vmatpush1.bf16.msra.mxu0 0
        %1227 = vmatprep.subr.bf16.mxu0 0
        %1228 = vmatpush1.bf16.msra.mxu0 0
        %1229 = vmatprep.subr.bf16.mxu0 0
        %1230 = vmatpush1.bf16.msra.mxu0 0
        %1231 = vmatprep.subr.bf16.mxu0 0
        %1232 = vmatpush1.bf16.msra.mxu0 0
        %1233 = vmatprep.subr.bf16.mxu0 0
        %1234 = vmatpush1.bf16.msra.mxu0 0
        %1235 = vmatprep.subr.bf16.mxu0 0
        %1236 = vmatpush1.bf16.msra.mxu0 0
        %1237 = vmatprep.subr.bf16.mxu0 0
        %1238 = vmatpush1.bf16.msra.mxu0 0
        %1239 = vmatprep.subr.bf16.mxu0 0
        %1240 = vmatpush1.bf16.msra.mxu0 0
        %1241 = vmatprep.subr.bf16.mxu0 0
        %1242 = vmatpush1.bf16.msra.mxu0 0
        %1243 = vmatprep.subr.bf16.mxu0 0
        %1244 = vmatpush1.bf16.msra.mxu0 0
        %1245 = vmatprep.subr.bf16.mxu0 0
        %1246 = vmatpush1.bf16.msra.mxu0 0
        %1247 = vmatprep.mubr.bf16.mxu0 0
        %1248 = vmatmul.mubr.bf16.gmra.mrb[0].mxu0 %v1213
        %v1249 = vpop.f32.mrb[0].mxu0
        %v1250 = vadd.f32 %v1198, %v1249
        %v1251 = vpop.f32.mrb[0].mxu0
        %v1252 = vpop.f32.mrb[0].mxu0
        %v1253 = vpop.f32.mrb[0].mxu0
        %1254 = vdwg.mxu0
        %v1255 = vmul.f32 %v1250, 0.5
        %v1256 = vmul.f32 %v1250, 0.044715
        %v1257 = vmul.f32 %v1256, %v1250
        %v1258 = vmul.f32 %v1257, %v1250
        %v1259 = vadd.f32 %v1250, %v1258
        %v1260 = vmul.f32 %v1259, 0.7978845
        %v1261 = vtanh.pop %v1260
        %v1262 = vadd.f32 %v1261, 1.0
        %v1263 = vmul.f32 %v1255, %v1262
        %v1264 = vpack.c.bf16 %v1263, %v1263
        %v1265 = vld [vmem:[%s394] sm:$0xf]
        %v1266 = vld [vmem:[%s394 + $0x4] sm:$0xf]
        %v1267 = vld [vmem:[%s394 + $0x8] sm:$0xf]
        %v1268 = vld [vmem:[%s394 + $0xc] sm:$0xf]
        %v1269 = vld [vmem:[%s394 + $0x10] sm:$0xf]
        %v1270 = vld [vmem:[%s394 + $0x14] sm:$0xf]
        %v1271 = vld [vmem:[%s394 + $0x18] sm:$0xf]
        %v1272 = vld [vmem:[%s394 + $0x1c] sm:$0xf]
        %v1273 = vld [vmem:[%s394 + $0x20] sm:$0xf]
        %v1274 = vld [vmem:[%s394 + $0x24] sm:$0xf]
        %v1275 = vld [vmem:[%s394 + $0x28] sm:$0xf]
        %v1276 = vld [vmem:[%s394 + $0x2c] sm:$0xf]
        %v1277 = vld [vmem:[%s394 + $0x30] sm:$0xf]
        %v1278 = vld [vmem:[%s394 + $0x34] sm:$0xf]
        %v1279 = vld [vmem:[%s394 + $0x38] sm:$0xf]
        %v1280 = vld [vmem:[%s394 + $0x3c] sm:$0xf]
        %v1281 = vlaneseq
        %v1282 = vshrl.u32 %v1281, 7
        %v1283 = vsub.s32 0, %v1282
        %v1284 = vrot.slane %v410, %v1283
        %v1301 = vunpack.c.l.b16 %v1265
        %v1302 = vunpack.c.l.b16 %v1266
        %v1303 = vunpack.c.l.b16 %v1267
        %v1304 = vunpack.c.l.b16 %v1268
        %v1305 = vunpack.c.l.b16 %v1269
        %v1306 = vunpack.c.l.b16 %v1270
        %v1307 = vunpack.c.l.b16 %v1271
        %v1308 = vunpack.c.l.b16 %v1272
        %v1309 = vunpack.c.l.b16 %v1273
        %v1310 = vunpack.c.l.b16 %v1274
        %v1311 = vunpack.c.l.b16 %v1275
        %v1312 = vunpack.c.l.b16 %v1276
        %v1313 = vunpack.c.l.b16 %v1277
        %v1314 = vunpack.c.l.b16 %v1278
        %v1315 = vunpack.c.l.b16 %v1279
        %v1316 = vunpack.c.l.b16 %v1280
        %v1317 = vpack.c.b16 %v1302, %v1301
        %v1318 = vpack.c.b16 %v1304, %v1303
        %v1319 = vpack.c.b16 %v1306, %v1305
        %v1320 = vpack.c.b16 %v1308, %v1307
        %v1321 = vpack.c.b16 %v1310, %v1309
        %v1322 = vpack.c.b16 %v1312, %v1311
        %v1323 = vpack.c.b16 %v1314, %v1313
        %v1324 = vpack.c.b16 %v1316, %v1315
        %1333 = vmatprep.subr.bf16.mxu0 0
        %1334 = vmatpush1.bf16.msra.mxu0 %v1317
        %1335 = vmatprep.subr.bf16.mxu0 0
        %1336 = vmatpush1.bf16.msra.mxu0 %v1318
        %1337 = vmatprep.subr.bf16.mxu0 0
        %1338 = vmatpush1.bf16.msra.mxu0 %v1319
        %1339 = vmatprep.subr.bf16.mxu0 0
        %1340 = vmatpush1.bf16.msra.mxu0 %v1320
        %1341 = vmatprep.subr.bf16.mxu0 0
        %1342 = vmatpush1.bf16.msra.mxu0 %v1321
        %1343 = vmatprep.subr.bf16.mxu0 0
        %1344 = vmatpush1.bf16.msra.mxu0 %v1322
        %1345 = vmatprep.subr.bf16.mxu0 0
        %1346 = vmatpush1.bf16.msra.mxu0 %v1323
        %1347 = vmatprep.subr.bf16.mxu0 0
        %1348 = vmatpush1.bf16.msra.mxu0 %v1324
        %1349 = vmatprep.subr.bf16.mxu0 0
        %1350 = vmatpush1.bf16.msra.mxu0 0
        %1351 = vmatprep.subr.bf16.mxu0 0
        %1352 = vmatpush1.bf16.msra.mxu0 0
        %1353 = vmatprep.subr.bf16.mxu0 0
        %1354 = vmatpush1.bf16.msra.mxu0 0
        %1355 = vmatprep.subr.bf16.mxu0 0
        %1356 = vmatpush1.bf16.msra.mxu0 0
        %1357 = vmatprep.subr.bf16.mxu0 0
        %1358 = vmatpush1.bf16.msra.mxu0 0
        %1359 = vmatprep.subr.bf16.mxu0 0
        %1360 = vmatpush1.bf16.msra.mxu0 0
        %1361 = vmatprep.subr.bf16.mxu0 0
        %1362 = vmatpush1.bf16.msra.mxu0 0
        %1363 = vmatprep.subr.bf16.mxu0 0
        %1364 = vmatpush1.bf16.msra.mxu0 0
        %1365 = vmatprep.mubr.bf16.mxu0 0
        %1366 = vmatmul.mubr.bf16.gmra.mrb[0].mxu0 %v1264
        %v1367 = vpop.f32.mrb[0].mxu0
        %v1368 = vadd.f32 %v1284, %v1367
        %v1369 = vpop.f32.mrb[0].mxu0
        %v1370 = vpop.f32.mrb[0].mxu0
        %v1371 = vpop.f32.mrb[0].mxu0
        %1372 = vdwg.mxu0
        %v1373 = vadd.f32 %v1368, %v1164
        %1374 = vst.msk [vmem:[%s367] sm:$0xff] %vm419, %v1373
        %s1375 = sand.u32 %s223, 1
        %s1376 = scalar_lea.sflag [#allocation3], %s1375
        %s1377 = sand.u32 %s223, 1
        %s1378 = smul.addr %s1377, 8
        %s1379 = scalar_lea.vmem [#allocation2], %s1378
        // Predicated region
        $region53: #{tpu_custom_call.1} parent=47 // pred_check
          %p1380 = pneg %p233
        $region54: #{tpu_custom_call.1} parent=47 // pred_check_branch
          %1382 = sbr.rel (%p1380) target = $region56
        $region55: #{tpu_custom_call.1} parent=47 // pred_region
          %s1384 = ssub.s32 128, 128
          %1385 = vsyncadd %s1376, %s1384
          %s1386 = smul.addr %s25, 128
          %s1387 = scalar_lea.hbm %s7, %s1386
          %s1389 = sshll.u32 %s1379, 4
          %s1390 = int_to_ptr.vmem [resolvable:$true] %s1389
          %1392 = dma.vmem_to_hbm [thread:$0]  %s1390, 128, %s1387, %s1376
        $region56: #{tpu_custom_call.1} parent=47 // pred_fallthru
          _
      $region48: #{tpu_custom_call.1} parent=5 // pred_fallthru
        _
      %p1393 = scmp.le.s32.totalorder 2, %s16
      // Predicated region
      $region57: #{tpu_custom_call.1} parent=5 // pred_check
        %p1394 = pneg %p1393
      $region58: #{tpu_custom_call.1} parent=5 // pred_check_branch
        %1396 = sbr.rel (%p1394) target = $region60
      $region59: #{tpu_custom_call.1} parent=5 // pred_region
        %s1397 = ssub.s32 %s16, 2
        // Predicated region
        $region61: #{tpu_custom_call.1} parent=59 // pred_check
          %p1398 = pneg %p239
        $region62: #{tpu_custom_call.1} parent=59 // pred_check_branch
          %1400 = sbr.rel (%p1398) target = $region64
        $region63: #{tpu_custom_call.1} parent=59 // pred_region
          %s1401 = sand.u32 %s224, 1
          %s1402 = scalar_lea.sflag [#allocation3], %s1401
          %s1403 = sand.u32 %s224, 1
          %s1404 = smul.addr %s1403, 8
          %s1405 = scalar_lea.vmem [#allocation2], %s1404
          %1406 = dma.done %s1402, 128
        $region64: #{tpu_custom_call.1} parent=59 // pred_fallthru
          _
      $region60: #{tpu_custom_call.1} parent=5 // pred_fallthru
        _
    $region6: #{tpu_custom_call.1} parent=1 // loop_footer
      %s20 = sadd.s32 1, %s16
    $region7: #{tpu_custom_call.1} parent=1 // loop_footer_branch
      %15 = sbr.rel target = $region3
    $region8: #{tpu_custom_call.1} parent=1 // loop_exit
      _
    %1407 = vsyncpa [#allocation3], 1
    %s1408 = scalar_lea.sflag [#allocation3], 1
    %1409 = vsyncpa %s1408, 1

</llo_original>
